<compile_context>
chip_gen: v5e
topology: v5e:2x2
jax: 0.10.0
libtpu: 0.0.40
codegen_flags: <defaults>
</compile_context>

<pallas_src>
import jax
import jax.numpy as jnp
import numpy as np
from jax.experimental import pallas as pl
from jax.experimental.pallas import tpu as pltpu

N_BATCH = 2
C_IN = 100
L_IN = 14          # 14 -conv-> 12 -pool-> 6 -conv-> 4 -pool-> 2  => 128*2 = 256 features
EPS = 1e-5

L1 = L_IN - 2      # 12  conv1 output length
P1 = L1 // 2       # 6   after pool1
L2 = P1 - 2        # 4   conv2 output length
P2 = L2 // 2       # 2   after pool2
C_PAD = 128        # lane-padded channel width (conv1 Cin/Cout, conv2 Cin/Cout)
H_PAD = 896        # hidden 800 padded to a multiple of 128
OUT_PAD = 8        # 5 logits padded to 8 (tiny masked store; no zero-column DMA waste)
N_OUT = 5


def _sigmoid(x):
    # Numerically stable sigmoid via tanh (EUP op): sigmoid(x) = 0.5*(tanh(x/2)+1)
    return 0.5 * (jnp.tanh(0.5 * x) + 1.0)


def cnn_kernel(x_ref, w1_ref, b1_ref, w2_ref, b2_ref,
               wf1_ref, bf1_ref, wf2_ref, bf2_ref, out_ref):
    n = out_ref.shape[0]

    # conv1 (+ folded BN) as one bf16 im2col matmul: (N*12, 384) @ (384, 128)
    h1 = _sigmoid(jnp.dot(x_ref[...], w1_ref[...],
                          preferred_element_type=jnp.float32) + b1_ref[...])
    p1 = jnp.max(h1.reshape(n, P1, 2, C_PAD), axis=2)             # MaxPool1d(2,2) -> (N,6,128)

    # conv2 (+ folded BN): 3 accumulated matmuls over the tap weights (3,128,128)
    p1b = p1.astype(jnp.bfloat16)
    s2 = jnp.zeros((n * L2, C_PAD), jnp.float32)
    for k in range(3):
        xk = p1b[:, k:k + L2, :].reshape(n * L2, C_PAD)
        s2 = s2 + jnp.dot(xk, w2_ref[k], preferred_element_type=jnp.float32)
    h2 = _sigmoid(s2 + b2_ref[...])
    p2 = jnp.max(h2.reshape(n, P2, 2, C_PAD), axis=2)             # (N, 2, 128)

    flat = p2.reshape(n, P2 * C_PAD).astype(jnp.bfloat16)         # (N, 256)
    h = _sigmoid(jnp.dot(flat, wf1_ref[...],
                         preferred_element_type=jnp.float32) + bf1_ref[...])
    # TODO(synk): Dropout(p=0.5) is identity in eval mode; training-mode RNG mask not implemented.
    out_ref[...] = jnp.dot(h.astype(jnp.bfloat16), wf2_ref[...],
                           preferred_element_type=jnp.float32) + bf2_ref[...]  # (N, 8)


def _prepare_weights(params):
    """One-time weight prep: fold BN (eval), transpose/pad to lane-dense bf16 matrices."""
    (w1, b1, g1, be1, m1, v1,
     w2, b2, g2, be2, m2, v2,
     wf1, bf1, wf2, bf2) = params
    f32, bf16 = jnp.float32, jnp.bfloat16

    # Fold BatchNorm (eval) into conv weights/biases: scale = g*rsqrt(var+eps)
    s1 = (g1 * jax.lax.rsqrt(v1 + EPS)).astype(f32)                # (64,)
    w1f = w1.astype(f32) * s1[:, None, None]                       # (64, 100, 3)
    b1f = ((b1 - m1) * s1 + be1).astype(f32)                       # (64,)
    s2 = (g2 * jax.lax.rsqrt(v2 + EPS)).astype(f32)                # (128,)
    w2f = w2.astype(f32) * s2[:, None, None]                       # (128, 64, 3)
    b2f = ((b2 - m2) * s2 + be2).astype(f32)                       # (128,)

    # conv1 im2col weight (3*128, 128): pad Cin 100->128, Cout 64->128 (zeros)
    w1_k = jnp.transpose(w1f, (2, 1, 0))                           # (3, 100, 64)
    w1_k = jnp.pad(w1_k, ((0, 0), (0, C_PAD - C_IN), (0, C_PAD - 64)))
    w1_k = w1_k.reshape(3 * C_PAD, C_PAD).astype(bf16)
    b1_k = jnp.pad(b1f, (0, C_PAD - 64)).reshape(1, C_PAD)

    # conv2 tap weights kept separate (3, 128, 128): pad Cin 64->128 (zeros)
    w2_k = jnp.transpose(w2f, (2, 1, 0))                           # (3, 64, 128)
    w2_k = jnp.pad(w2_k, ((0, 0), (0, C_PAD - 64), (0, 0))).astype(bf16)
    b2_k = b2f.reshape(1, C_PAD)

    # fc1: torch flattens (N, C=128, L=2) as c*2+l; kernel flattens (N, L, C) as
    # l*128+c, so permute columns accordingly; pad hidden 800 -> 896 (zeros)
    wf1_k = jnp.transpose(wf1.reshape(800, 128, 2), (2, 1, 0)).reshape(256, 800)
    wf1_k = jnp.pad(wf1_k, ((0, 0), (0, H_PAD - 800))).astype(bf16)
    bf1_k = jnp.pad(bf1.astype(f32), (0, H_PAD - 800)).reshape(1, H_PAD)

    # fc2: (5, 800) -> (896, 8): only 3 zero output cols, no 123-col zero DMA
    wf2_k = jnp.pad(jnp.transpose(wf2),
                    ((0, H_PAD - 800), (0, OUT_PAD - N_OUT))).astype(bf16)
    bf2_k = jnp.pad(bf2.astype(f32), (0, OUT_PAD - N_OUT)).reshape(1, OUT_PAD)

    return (w1_k, b1_k, w2_k, b2_k, wf1_k, bf1_k, wf2_k, bf2_k)


def make_cnn_forward(params, n=N_BATCH):
    """Build a jitted forward fn. Weight prep runs exactly once, here."""
    prep = tuple(jax.device_put(w) for w in _prepare_weights(params))

    flops = 2 * (n * L1 * (3 * C_PAD) * C_PAD          # conv1 im2col matmul
                 + 3 * n * L2 * C_PAD * C_PAD          # conv2, 3 tap matmuls
                 + n * (P2 * C_PAD) * H_PAD            # fc1
                 + n * H_PAD * OUT_PAD)                # fc2
    transcendentals = n * L1 * C_PAD + n * L2 * C_PAD + n * H_PAD
    x_bytes = n * L1 * 3 * C_PAD * 2                   # bf16 im2col input
    out_bytes = n * OUT_PAD * 4
    w_bytes = sum(int(np.prod(w.shape)) * w.dtype.itemsize for w in prep)
    cost = pl.CostEstimate(flops=flops, transcendentals=transcendentals,
                           bytes_accessed=x_bytes + w_bytes + out_bytes)

    call = pl.pallas_call(
        cnn_kernel,
        out_shape=jax.ShapeDtypeStruct((n, OUT_PAD), jnp.float32),
        in_specs=[pl.BlockSpec(memory_space=pltpu.MemorySpace.VMEM)] * (1 + len(prep)),
        out_specs=pl.BlockSpec(memory_space=pltpu.MemorySpace.VMEM),
        cost_estimate=cost,
    )

    @jax.jit
    def fwd(x_ncl):
        # Per-call x-path glue only: NCL -> NLC, pad Cin 100->128, conv1 im2col, bf16 cast.
        x_nlc = jnp.transpose(x_ncl, (0, 2, 1)).astype(jnp.float32)   # (N, 14, 100)
        x_nlc = jnp.pad(x_nlc, ((0, 0), (0, 0), (0, C_PAD - C_IN)))   # (N, 14, 128)
        x_im2col = jnp.concatenate([x_nlc[:, k:k + L1, :] for k in range(3)],
                                   axis=-1).reshape(n * L1, 3 * C_PAD)  # (N*12, 384)
        out = call(x_im2col.astype(jnp.bfloat16), *prep)
        return out[:, :N_OUT]

    return fwd


def ref_forward(x_ncl, params):
    """Pure-JAX f32 reference matching the PyTorch module in eval mode (NCL layout)."""
    (w1, b1, g1, be1, m1, v1,
     w2, b2, g2, be2, m2, v2,
     wf1, bf1, wf2, bf2) = params

    def conv1d(x, w, b):
        y = jax.lax.conv_general_dilated(x, w, window_strides=(1,), padding='VALID',
                                         dimension_numbers=('NCH', 'OIH', 'NCH'))
        return y + b[None, :, None]

    def bn(x, g, be, m, v):
        return (g[None, :, None] * (x - m[None, :, None])
                * jax.lax.rsqrt(v[None, :, None] + EPS) + be[None, :, None])

    def pool(x):
        n, c, l = x.shape
        return jnp.max(x.reshape(n, c, l // 2, 2), axis=-1)

    sig = lambda z: 1.0 / (1.0 + jnp.exp(-z))
    h = pool(sig(bn(conv1d(x_ncl, w1, b1), g1, be1, m1, v1)))
    h = pool(sig(bn(conv1d(h, w2, b2), g2, be2, m2, v2)))
    flat = h.reshape(h.shape[0], 256)
    d = sig(flat @ wf1.T + bf1)
    return d @ wf2.T + bf2


def make_params(key):
    ks = jax.random.split(key, 24)
    u = lambda k, shape, b: jax.random.uniform(k, shape, jnp.float32, -b, b)
    nrm = lambda k, shape: jax.random.normal(k, shape, jnp.float32)

    b1c = 1.0 / np.sqrt(100 * 3)
    w1 = u(ks[0], (64, 100, 3), b1c); b1 = u(ks[1], (64,), b1c)
    g1 = 1.0 + 0.1 * nrm(ks[2], (64,)); be1 = 0.1 * nrm(ks[3], (64,))
    m1 = 0.1 * nrm(ks[4], (64,)); v1 = jax.random.uniform(ks[5], (64,), jnp.float32, 0.5, 1.5)

    b2c = 1.0 / np.sqrt(64 * 3)
    w2 = u(ks[6], (128, 64, 3), b2c); b2 = u(ks[7], (128,), b2c)
    g2 = 1.0 + 0.1 * nrm(ks[8], (128,)); be2 = 0.1 * nrm(ks[9], (128,))
    m2 = 0.1 * nrm(ks[10], (128,)); v2 = jax.random.uniform(ks[11], (128,), jnp.float32, 0.5, 1.5)

    f1c = 1.0 / np.sqrt(256)
    wf1 = u(ks[12], (800, 256), f1c); bf1 = u(ks[13], (800,), f1c)
    f2c = 1.0 / np.sqrt(800)
    wf2 = u(ks[14], (5, 800), f2c); bf2 = u(ks[15], (5,), f2c)

    return (w1, b1, g1, be1, m1, v1,
            w2, b2, g2, be2, m2, v2,
            wf1, bf1, wf2, bf2)


if __name__ == "__main__":
    key = jax.random.PRNGKey(0)
    k_params, k_x = jax.random.split(key)
    params = make_params(k_params)
    x = jax.random.normal(k_x, (N_BATCH, C_IN, L_IN), jnp.float32)   # NCL, like torch

    forward = make_cnn_forward(params, n=N_BATCH)       # weight prep happens once here
    out = jax.block_until_ready(forward(x))
    ref = jax.block_until_ready(ref_forward(x, params))

    assert out.shape == (N_BATCH, 5), out.shape
    # bf16 weights/activations at the matmuls -> loosened tolerance vs the f32 reference
    np.testing.assert_allclose(np.asarray(out), np.asarray(ref), rtol=2e-2, atol=2e-2)
    print("KERNEL_OK")
</pallas_src>

<mosaic_0001>
module attributes {stable_mosaic.version = 11 : i64} {
  func.func @cnn_kernel(%arg0: memref<24x384xbf16, #tpu.memory_space<vmem>>, %arg1: memref<384x128xbf16, #tpu.memory_space<vmem>>, %arg2: memref<1x128xf32, #tpu.memory_space<vmem>>, %arg3: memref<3x128x128xbf16, #tpu.memory_space<vmem>>, %arg4: memref<1x128xf32, #tpu.memory_space<vmem>>, %arg5: memref<256x896xbf16, #tpu.memory_space<vmem>>, %arg6: memref<1x896xf32, #tpu.memory_space<vmem>>, %arg7: memref<896x8xbf16, #tpu.memory_space<vmem>>, %arg8: memref<1x8xf32, #tpu.memory_space<vmem>>, %arg9: memref<2x8xf32, #tpu.memory_space<vmem>>) attributes {dimension_semantics = [], scalar_prefetch = 0 : i64, scratch_operands = 0 : i64, tpu.core_type = #tpu.core_type<tc>} {
    %c0 = arith.constant 0 : index
    %c0_0 = arith.constant 0 : index
    %0 = vector.load %arg0[%c0, %c0_0] : memref<24x384xbf16, #tpu.memory_space<vmem>>, vector<24x384xbf16>
    %c0_1 = arith.constant 0 : index
    %c0_2 = arith.constant 0 : index
    %1 = vector.load %arg1[%c0_1, %c0_2] : memref<384x128xbf16, #tpu.memory_space<vmem>>, vector<384x128xbf16>
    %cst = arith.constant dense<0.000000e+00> : vector<24x128xf32>
    %2 = tpu.matmul %0, %1, %cst {dimension_numbers = #tpu.dot_dimension_numbers<[1], [0], [0], [1], [0, 0, 1, 1], [], []>} : vector<24x384xbf16>, vector<384x128xbf16>, vector<24x128xf32> -> vector<24x128xf32>
    %c0_3 = arith.constant 0 : index
    %c0_4 = arith.constant 0 : index
    %3 = vector.load %arg2[%c0_3, %c0_4] : memref<1x128xf32, #tpu.memory_space<vmem>>, vector<1x128xf32>
    %4 = vector.broadcast %3 : vector<1x128xf32> to vector<24x128xf32>
    %5 = arith.addf %2, %4 : vector<24x128xf32>
    %cst_5 = arith.constant 5.000000e-01 : f32
    %6 = vector.broadcast %cst_5 : f32 to vector<24x128xf32>
    %7 = arith.mulf %6, %5 : vector<24x128xf32>
    %8 = math.tanh %7 : vector<24x128xf32>
    %cst_6 = arith.constant 1.000000e+00 : f32
    %9 = vector.broadcast %cst_6 : f32 to vector<24x128xf32>
    %10 = arith.addf %8, %9 : vector<24x128xf32>
    %cst_7 = arith.constant 5.000000e-01 : f32
    %11 = vector.broadcast %cst_7 : f32 to vector<24x128xf32>
    %12 = arith.mulf %11, %10 : vector<24x128xf32>
    %13 = vector.shape_cast %12 : vector<24x128xf32> to vector<2x6x2x128xf32>
    %cst_8 = arith.constant dense<0xFF800000> : vector<2x6x128xf32>
    %14 = vector.multi_reduction <maximumf>, %13, %cst_8 [2] : vector<2x6x2x128xf32> to vector<2x6x128xf32>
    %15 = arith.truncf %14 : vector<2x6x128xf32> to vector<2x6x128xbf16>
    %cst_9 = arith.constant 0.000000e+00 : f32
    %16 = vector.broadcast %cst_9 : f32 to vector<8x128xf32>
    %17 = vector.extract_strided_slice %15 {offsets = [0, 0, 0], sizes = [2, 4, 128], strides = [1, 1, 1]} : vector<2x6x128xbf16> to vector<2x4x128xbf16>
    %18 = vector.shape_cast %17 : vector<2x4x128xbf16> to vector<8x128xbf16>
    %c0_10 = arith.constant 0 : index
    %c0_11 = arith.constant 0 : index
    %c0_12 = arith.constant 0 : index
    %19 = vector.load %arg3[%c0_10, %c0_11, %c0_12] : memref<3x128x128xbf16, #tpu.memory_space<vmem>>, vector<1x128x128xbf16>
    %20 = vector.shape_cast %19 : vector<1x128x128xbf16> to vector<128x128xbf16>
    %cst_13 = arith.constant dense<0.000000e+00> : vector<8x128xf32>
    %21 = tpu.matmul %18, %20, %cst_13 {dimension_numbers = #tpu.dot_dimension_numbers<[1], [0], [0], [1], [0, 0, 1, 1], [], []>} : vector<8x128xbf16>, vector<128x128xbf16>, vector<8x128xf32> -> vector<8x128xf32>
    %22 = arith.addf %16, %21 : vector<8x128xf32>
    %23 = vector.extract_strided_slice %15 {offsets = [0, 1, 0], sizes = [2, 4, 128], strides = [1, 1, 1]} : vector<2x6x128xbf16> to vector<2x4x128xbf16>
    %24 = vector.shape_cast %23 : vector<2x4x128xbf16> to vector<8x128xbf16>
    %c1 = arith.constant 1 : index
    %c0_14 = arith.constant 0 : index
    %c0_15 = arith.constant 0 : index
    %25 = vector.load %arg3[%c1, %c0_14, %c0_15] : memref<3x128x128xbf16, #tpu.memory_space<vmem>>, vector<1x128x128xbf16>
    %26 = vector.shape_cast %25 : vector<1x128x128xbf16> to vector<128x128xbf16>
    %cst_16 = arith.constant dense<0.000000e+00> : vector<8x128xf32>
    %27 = tpu.matmul %24, %26, %cst_16 {dimension_numbers = #tpu.dot_dimension_numbers<[1], [0], [0], [1], [0, 0, 1, 1], [], []>} : vector<8x128xbf16>, vector<128x128xbf16>, vector<8x128xf32> -> vector<8x128xf32>
    %28 = arith.addf %22, %27 : vector<8x128xf32>
    %29 = vector.extract_strided_slice %15 {offsets = [0, 2, 0], sizes = [2, 4, 128], strides = [1, 1, 1]} : vector<2x6x128xbf16> to vector<2x4x128xbf16>
    %30 = vector.shape_cast %29 : vector<2x4x128xbf16> to vector<8x128xbf16>
    %c2 = arith.constant 2 : index
    %c0_17 = arith.constant 0 : index
    %c0_18 = arith.constant 0 : index
    %31 = vector.load %arg3[%c2, %c0_17, %c0_18] : memref<3x128x128xbf16, #tpu.memory_space<vmem>>, vector<1x128x128xbf16>
    %32 = vector.shape_cast %31 : vector<1x128x128xbf16> to vector<128x128xbf16>
    %cst_19 = arith.constant dense<0.000000e+00> : vector<8x128xf32>
    %33 = tpu.matmul %30, %32, %cst_19 {dimension_numbers = #tpu.dot_dimension_numbers<[1], [0], [0], [1], [0, 0, 1, 1], [], []>} : vector<8x128xbf16>, vector<128x128xbf16>, vector<8x128xf32> -> vector<8x128xf32>
    %34 = arith.addf %28, %33 : vector<8x128xf32>
    %c0_20 = arith.constant 0 : index
    %c0_21 = arith.constant 0 : index
    %35 = vector.load %arg4[%c0_20, %c0_21] : memref<1x128xf32, #tpu.memory_space<vmem>>, vector<1x128xf32>
    %36 = vector.broadcast %35 : vector<1x128xf32> to vector<8x128xf32>
    %37 = arith.addf %34, %36 : vector<8x128xf32>
    %cst_22 = arith.constant 5.000000e-01 : f32
    %38 = vector.broadcast %cst_22 : f32 to vector<8x128xf32>
    %39 = arith.mulf %38, %37 : vector<8x128xf32>
    %40 = math.tanh %39 : vector<8x128xf32>
    %cst_23 = arith.constant 1.000000e+00 : f32
    %41 = vector.broadcast %cst_23 : f32 to vector<8x128xf32>
    %42 = arith.addf %40, %41 : vector<8x128xf32>
    %cst_24 = arith.constant 5.000000e-01 : f32
    %43 = vector.broadcast %cst_24 : f32 to vector<8x128xf32>
    %44 = arith.mulf %43, %42 : vector<8x128xf32>
    %45 = vector.shape_cast %44 : vector<8x128xf32> to vector<2x2x2x128xf32>
    %cst_25 = arith.constant dense<0xFF800000> : vector<2x2x128xf32>
    %46 = vector.multi_reduction <maximumf>, %45, %cst_25 [2] : vector<2x2x2x128xf32> to vector<2x2x128xf32>
    %47 = vector.shape_cast %46 : vector<2x2x128xf32> to vector<2x256xf32>
    %48 = arith.truncf %47 : vector<2x256xf32> to vector<2x256xbf16>
    %c0_26 = arith.constant 0 : index
    %c0_27 = arith.constant 0 : index
    %49 = vector.load %arg5[%c0_26, %c0_27] : memref<256x896xbf16, #tpu.memory_space<vmem>>, vector<256x896xbf16>
    %cst_28 = arith.constant dense<0.000000e+00> : vector<2x896xf32>
    %50 = tpu.matmul %48, %49, %cst_28 {dimension_numbers = #tpu.dot_dimension_numbers<[1], [0], [0], [1], [0, 0, 1, 1], [], []>} : vector<2x256xbf16>, vector<256x896xbf16>, vector<2x896xf32> -> vector<2x896xf32>
    %c0_29 = arith.constant 0 : index
    %c0_30 = arith.constant 0 : index
    %51 = vector.load %arg6[%c0_29, %c0_30] : memref<1x896xf32, #tpu.memory_space<vmem>>, vector<1x896xf32>
    %52 = vector.broadcast %51 : vector<1x896xf32> to vector<2x896xf32>
    %53 = arith.addf %50, %52 : vector<2x896xf32>
    %cst_31 = arith.constant 5.000000e-01 : f32
    %54 = vector.broadcast %cst_31 : f32 to vector<2x896xf32>
    %55 = arith.mulf %54, %53 : vector<2x896xf32>
    %56 = math.tanh %55 : vector<2x896xf32>
    %cst_32 = arith.constant 1.000000e+00 : f32
    %57 = vector.broadcast %cst_32 : f32 to vector<2x896xf32>
    %58 = arith.addf %56, %57 : vector<2x896xf32>
    %cst_33 = arith.constant 5.000000e-01 : f32
    %59 = vector.broadcast %cst_33 : f32 to vector<2x896xf32>
    %60 = arith.mulf %59, %58 : vector<2x896xf32>
    %61 = arith.truncf %60 : vector<2x896xf32> to vector<2x896xbf16>
    %c0_34 = arith.constant 0 : index
    %c0_35 = arith.constant 0 : index
    %62 = vector.load %arg7[%c0_34, %c0_35] : memref<896x8xbf16, #tpu.memory_space<vmem>>, vector<896x8xbf16>
    %cst_36 = arith.constant dense<0.000000e+00> : vector<2x8xf32>
    %63 = tpu.matmul %61, %62, %cst_36 {dimension_numbers = #tpu.dot_dimension_numbers<[1], [0], [0], [1], [0, 0, 1, 1], [], []>} : vector<2x896xbf16>, vector<896x8xbf16>, vector<2x8xf32> -> vector<2x8xf32>
    %c0_37 = arith.constant 0 : index
    %c0_38 = arith.constant 0 : index
    %64 = vector.load %arg8[%c0_37, %c0_38] : memref<1x8xf32, #tpu.memory_space<vmem>>, vector<1x8xf32>
    %65 = vector.broadcast %64 : vector<1x8xf32> to vector<2x8xf32>
    %66 = arith.addf %63, %65 : vector<2x8xf32>
    %c0_39 = arith.constant 0 : index
    %c0_40 = arith.constant 0 : index
    %67 = vector.load %arg9[%c0_39, %c0_40] : memref<2x8xf32, #tpu.memory_space<vmem>>, vector<2x8xf32>
    tpu.vector_store %arg9[%c0_39, %c0_40], %66 {strides = array<i32>} : memref<2x8xf32, #tpu.memory_space<vmem>>, vector<2x8xf32>,
    return
  }
}

</mosaic_0001>

<llo_original>
// kernel: fwd.1
$region0: #{fwd.1}
  #allocation0 [shape = 'u32[]', space=smem, size = 0x4, offset = 0x4, fixed_abs, tag = 'smem constant byte address 0x4 - core index']
  #allocation1 [shape = 'u32[72,128]{1,0:T(1,128)}', space=vmem, size = 0x9000, scoped, tag = 'internal scratch']
  %s0 = inlined_call_operand.vmem [shape: bf16[24,384], index: 0, kind: input, shape index: {}]
  %s1 = inlined_call_operand.hbm [shape: bf16[384,128], index: 1, kind: input, shape index: {}]
  %s2 = inlined_call_operand.vmem [shape: f32[1,128], index: 2, kind: input, shape index: {}]
  %s3 = inlined_call_operand.vmem [shape: bf16[3,128,128], index: 3, kind: input, shape index: {}]
  %s4 = inlined_call_operand.vmem [shape: f32[1,128], index: 4, kind: input, shape index: {}]
  %s5 = inlined_call_operand.hbm [shape: bf16[256,896], index: 5, kind: input, shape index: {}]
  %s6 = inlined_call_operand.vmem [shape: f32[1,896], index: 6, kind: input, shape index: {}]
  %s7 = inlined_call_operand.hbm [shape: bf16[896,8], index: 7, kind: input, shape index: {}]
  %s8 = inlined_call_operand.vmem [shape: f32[1,8], index: 8, kind: input, shape index: {}]
  %s9 = inlined_call_operand.hbm [shape: f32[2,8], index: 9, kind: output, shape index: {}]
  %s10 = sld [smem:[#allocation0]]
  $region58: #{fwd.1} parent=0
    _
  %s12 = ssub.s32 1, %s10
  %s13 = scalar_select 0, %s12, %s10
  $region1: #{fwd.1} parent=0
    #allocation2 [shape = 'u8[98304]{0}', space=vmem, size = 0x18000, scoped, tag = 'input window, operand 1, single buffered']
    #allocation3 [shape = 's32[1]{0}', space=sflag, size = 0x4, scoped, tag = 'scoped memory for fwd.1']
    #allocation4 [shape = 's32[1]{0}', space=sflag, size = 0x4, scoped, tag = 'scoped memory for fwd.1']
    #allocation5 [shape = 'u8[458752]{0}', space=vmem, size = 0x70000, scoped, tag = 'input window, operand 5, single buffered']
    #allocation6 [shape = 's32[1]{0}', space=sflag, size = 0x4, scoped, tag = 'scoped memory for fwd.1']
    #allocation7 [shape = 'u8[229376]{0}', space=vmem, size = 0x38000, scoped, tag = 'input window, operand 7, single buffered']
    #allocation8 [shape = 'u8[1024]{0}', space=vmem, size = 0x400, scoped, tag = 'output window, operand 0, single buffered']
    %14 = vsyncpa [#allocation3], 0
    %15 = vsyncpa [#allocation6], 0
    %16 = vsyncpa [#allocation4], 0
    // Predicated region
    $region2: #{fwd.1} parent=1 // pred_check
      _
    $region3: #{fwd.1} parent=1 // pred_check_branch
      %18 = sbr.rel (0) target = $region5
    $region4: #{fwd.1} parent=1 // pred_region
      _
    $region5: #{fwd.1} parent=1 // pred_fallthru
      _
    // Predicated region
    $region6: #{fwd.1} parent=1 // pred_check
      _
    $region7: #{fwd.1} parent=1 // pred_check_branch
      %20 = sbr.rel (0) target = $region9
    $region8: #{fwd.1} parent=1 // pred_region
      %22 = vsyncadd [#allocation3], 0
      %s23 = sshll.u32 %s1, 4
      %s24 = int_to_ptr.hbm [resolvable:$true] %s23
      %s25 = sshll.u32 [#allocation2], 4
      %s26 = int_to_ptr.vmem [resolvable:$true] %s25
      %31 = dma.hbm_to_vmem [thread:$0]  %s24, 3072, %s26, [#allocation3], 64, 64, 4
    $region9: #{fwd.1} parent=1 // pred_fallthru
      _
    // Predicated region
    $region10: #{fwd.1} parent=1 // pred_check
      _
    $region11: #{fwd.1} parent=1 // pred_check_branch
      %33 = sbr.rel (0) target = $region13
    $region12: #{fwd.1} parent=1 // pred_region
      _
    $region13: #{fwd.1} parent=1 // pred_fallthru
      _
    // Predicated region
    $region14: #{fwd.1} parent=1 // pred_check
      _
    $region15: #{fwd.1} parent=1 // pred_check_branch
      %35 = sbr.rel (0) target = $region17
    $region16: #{fwd.1} parent=1 // pred_region
      _
    $region17: #{fwd.1} parent=1 // pred_fallthru
      _
    // Predicated region
    $region18: #{fwd.1} parent=1 // pred_check
      _
    $region19: #{fwd.1} parent=1 // pred_check_branch
      %37 = sbr.rel (0) target = $region21
    $region20: #{fwd.1} parent=1 // pred_region
      _
    $region21: #{fwd.1} parent=1 // pred_fallthru
      _
    // Predicated region
    $region22: #{fwd.1} parent=1 // pred_check
      _
    $region23: #{fwd.1} parent=1 // pred_check_branch
      %39 = sbr.rel (0) target = $region25
    $region24: #{fwd.1} parent=1 // pred_region
      %41 = vsyncadd [#allocation6], 0
      %s42 = sshll.u32 %s5, 4
      %s43 = int_to_ptr.hbm [resolvable:$true] %s42
      %s44 = sshll.u32 [#allocation5], 4
      %s45 = int_to_ptr.vmem [resolvable:$true] %s44
      %50 = dma.hbm_to_vmem [thread:$0]  %s43, 14336, %s45, [#allocation6], 448, 448, 28
    $region25: #{fwd.1} parent=1 // pred_fallthru
      _
    // Predicated region
    $region26: #{fwd.1} parent=1 // pred_check
      _
    $region27: #{fwd.1} parent=1 // pred_check_branch
      %52 = sbr.rel (0) target = $region29
    $region28: #{fwd.1} parent=1 // pred_region
      _
    $region29: #{fwd.1} parent=1 // pred_fallthru
      _
    // Predicated region
    $region30: #{fwd.1} parent=1 // pred_check
      _
    $region31: #{fwd.1} parent=1 // pred_check_branch
      %54 = sbr.rel (0) target = $region33
    $region32: #{fwd.1} parent=1 // pred_region
      %56 = vsyncadd [#allocation6], 0
      %s57 = sshll.u32 %s7, 4
      %s58 = int_to_ptr.hbm [resolvable:$true] %s57
      %s59 = sshll.u32 [#allocation7], 4
      %s60 = int_to_ptr.vmem [resolvable:$true] %s59
      %65 = dma.hbm_to_vmem [thread:$0]  %s58, 7168, %s60, [#allocation6], 64, 64, 4
    $region33: #{fwd.1} parent=1 // pred_fallthru
      _
    // Predicated region
    $region34: #{fwd.1} parent=1 // pred_check
      _
    $region35: #{fwd.1} parent=1 // pred_check_branch
      %67 = sbr.rel (0) target = $region37
    $region36: #{fwd.1} parent=1 // pred_region
      _
    $region37: #{fwd.1} parent=1 // pred_fallthru
      _
    // Predicated region
    $region38: #{fwd.1} parent=1 // pred_check
      _
    $region39: #{fwd.1} parent=1 // pred_check_branch
      %69 = sbr.rel (0) target = $region41
    $region40: #{fwd.1} parent=1 // pred_region
      %71 = dma.done [#allocation3], 3072
    $region41: #{fwd.1} parent=1 // pred_fallthru
      _
    // Predicated region
    $region42: #{fwd.1} parent=1 // pred_check
      _
    $region43: #{fwd.1} parent=1 // pred_check_branch
      %73 = sbr.rel (0) target = $region45
    $region44: #{fwd.1} parent=1 // pred_region
      %75 = dma.done [#allocation6], 14336
    $region45: #{fwd.1} parent=1 // pred_fallthru
      _
    // Predicated region
    $region46: #{fwd.1} parent=1 // pred_check
      _
    $region47: #{fwd.1} parent=1 // pred_check_branch
      %77 = sbr.rel (0) target = $region49
    $region48: #{fwd.1} parent=1 // pred_region
      %79 = dma.done [#allocation6], 7168
    $region49: #{fwd.1} parent=1 // pred_fallthru
      _
    %v80 = vld [vmem:[%s0] sm:$0xff]
    %v81 = vld [vmem:[%s0 + $0x8] sm:$0xf]
    %v82 = vld [vmem:[%s0 + $0xc] sm:$0xff]
    %v83 = vld [vmem:[%s0 + $0x14] sm:$0xf]
    %v84 = vld [vmem:[%s0 + $0x18] sm:$0xff]
    %v85 = vld [vmem:[%s0 + $0x20] sm:$0xf]
    %v86 = vld [vmem:[#allocation2] sm:$0xf]
    %v87 = vld [vmem:[#allocation2 + $0x4] sm:$0xf]
    %v88 = vld [vmem:[#allocation2 + $0x8] sm:$0xf]
    %v89 = vld [vmem:[#allocation2 + $0xc] sm:$0xf]
    %v90 = vld [vmem:[#allocation2 + $0x10] sm:$0xf]
    %v91 = vld [vmem:[#allocation2 + $0x14] sm:$0xf]
    %v92 = vld [vmem:[#allocation2 + $0x18] sm:$0xf]
    %v93 = vld [vmem:[#allocation2 + $0x1c] sm:$0xf]
    %v94 = vld [vmem:[#allocation2 + $0x20] sm:$0xf]
    %v95 = vld [vmem:[#allocation2 + $0x24] sm:$0xf]
    %v96 = vld [vmem:[#allocation2 + $0x28] sm:$0xf]
    %v97 = vld [vmem:[#allocation2 + $0x2c] sm:$0xf]
    %v98 = vld [vmem:[#allocation2 + $0x30] sm:$0xf]
    %v99 = vld [vmem:[#allocation2 + $0x34] sm:$0xf]
    %v100 = vld [vmem:[#allocation2 + $0x38] sm:$0xf]
    %v101 = vld [vmem:[#allocation2 + $0x3c] sm:$0xf]
    %v102 = vld [vmem:[#allocation2 + $0x40] sm:$0xf]
    %v103 = vld [vmem:[#allocation2 + $0x44] sm:$0xf]
    %v104 = vld [vmem:[#allocation2 + $0x48] sm:$0xf]
    %v105 = vld [vmem:[#allocation2 + $0x4c] sm:$0xf]
    %v106 = vld [vmem:[#allocation2 + $0x50] sm:$0xf]
    %v107 = vld [vmem:[#allocation2 + $0x54] sm:$0xf]
    %v108 = vld [vmem:[#allocation2 + $0x58] sm:$0xf]
    %v109 = vld [vmem:[#allocation2 + $0x5c] sm:$0xf]
    %v110 = vld [vmem:[#allocation2 + $0x60] sm:$0xf]
    %v111 = vld [vmem:[#allocation2 + $0x64] sm:$0xf]
    %v112 = vld [vmem:[#allocation2 + $0x68] sm:$0xf]
    %v113 = vld [vmem:[#allocation2 + $0x6c] sm:$0xf]
    %v114 = vld [vmem:[#allocation2 + $0x70] sm:$0xf]
    %v115 = vld [vmem:[#allocation2 + $0x74] sm:$0xf]
    %v116 = vld [vmem:[#allocation2 + $0x78] sm:$0xf]
    %v117 = vld [vmem:[#allocation2 + $0x7c] sm:$0xf]
    %v118 = vld [vmem:[#allocation2 + $0x80] sm:$0xf]
    %v119 = vld [vmem:[#allocation2 + $0x84] sm:$0xf]
    %v120 = vld [vmem:[#allocation2 + $0x88] sm:$0xf]
    %v121 = vld [vmem:[#allocation2 + $0x8c] sm:$0xf]
    %v122 = vld [vmem:[#allocation2 + $0x90] sm:$0xf]
    %v123 = vld [vmem:[#allocation2 + $0x94] sm:$0xf]
    %v124 = vld [vmem:[#allocation2 + $0x98] sm:$0xf]
    %v125 = vld [vmem:[#allocation2 + $0x9c] sm:$0xf]
    %v126 = vld [vmem:[#allocation2 + $0xa0] sm:$0xf]
    %v127 = vld [vmem:[#allocation2 + $0xa4] sm:$0xf]
    %v128 = vld [vmem:[#allocation2 + $0xa8] sm:$0xf]
    %v129 = vld [vmem:[#allocation2 + $0xac] sm:$0xf]
    %v130 = vld [vmem:[#allocation2 + $0xb0] sm:$0xf]
    %v131 = vld [vmem:[#allocation2 + $0xb4] sm:$0xf]
    %v132 = vld [vmem:[#allocation2 + $0xb8] sm:$0xf]
    %v133 = vld [vmem:[#allocation2 + $0xbc] sm:$0xf]
    %v134 = vld [vmem:[%s2] sm:$0x1]
    %v136 = vperm.slane %v134, 0
    %v144 = vunpack.c.l.b16 %v80
    %v145 = vunpack.c.h.b16 %v80
    %v146 = vunpack.c.l.b16 %v81
    %v147 = vunpack.c.l.b16 %v82
    %v148 = vunpack.c.h.b16 %v82
    %v149 = vunpack.c.l.b16 %v83
    %v150 = vunpack.c.l.b16 %v84
    %v151 = vunpack.c.h.b16 %v84
    %v152 = vunpack.c.l.b16 %v85
    %v153 = vpack.c.b16 %v147, %v144
    %v154 = vpack.c.b16 %v148, %v145
    %v155 = vpack.c.b16 %v149, %v146
    %v156 = vpack.c.b16 %v150, %v150
    %v157 = vpack.c.b16 %v151, %v151
    %v158 = vpack.c.b16 %v152, %v152
    %v213 = vunpack.c.l.b16 %v86
    %v214 = vunpack.c.l.b16 %v87
    %v215 = vunpack.c.l.b16 %v88
    %v216 = vunpack.c.l.b16 %v89
    %v217 = vunpack.c.l.b16 %v90
    %v218 = vunpack.c.l.b16 %v91
    %v219 = vunpack.c.l.b16 %v92
    %v220 = vunpack.c.l.b16 %v93
    %v221 = vunpack.c.l.b16 %v94
    %v222 = vunpack.c.l.b16 %v95
    %v223 = vunpack.c.l.b16 %v96
    %v224 = vunpack.c.l.b16 %v97
    %v225 = vunpack.c.l.b16 %v98
    %v226 = vunpack.c.l.b16 %v99
    %v227 = vunpack.c.l.b16 %v100
    %v228 = vunpack.c.l.b16 %v101
    %v229 = vunpack.c.l.b16 %v102
    %v230 = vunpack.c.l.b16 %v103
    %v231 = vunpack.c.l.b16 %v104
    %v232 = vunpack.c.l.b16 %v105
    %v233 = vunpack.c.l.b16 %v106
    %v234 = vunpack.c.l.b16 %v107
    %v235 = vunpack.c.l.b16 %v108
    %v236 = vunpack.c.l.b16 %v109
    %v237 = vunpack.c.l.b16 %v110
    %v238 = vunpack.c.l.b16 %v111
    %v239 = vunpack.c.l.b16 %v112
    %v240 = vunpack.c.l.b16 %v113
    %v241 = vunpack.c.l.b16 %v114
    %v242 = vunpack.c.l.b16 %v115
    %v243 = vunpack.c.l.b16 %v116
    %v244 = vunpack.c.l.b16 %v117
    %v245 = vunpack.c.l.b16 %v118
    %v246 = vunpack.c.l.b16 %v119
    %v247 = vunpack.c.l.b16 %v120
    %v248 = vunpack.c.l.b16 %v121
    %v249 = vunpack.c.l.b16 %v122
    %v250 = vunpack.c.l.b16 %v123
    %v251 = vunpack.c.l.b16 %v124
    %v252 = vunpack.c.l.b16 %v125
    %v253 = vunpack.c.l.b16 %v126
    %v254 = vunpack.c.l.b16 %v127
    %v255 = vunpack.c.l.b16 %v128
    %v256 = vunpack.c.l.b16 %v129
    %v257 = vunpack.c.l.b16 %v130
    %v258 = vunpack.c.l.b16 %v131
    %v259 = vunpack.c.l.b16 %v132
    %v260 = vunpack.c.l.b16 %v133
    %v261 = vpack.c.b16 %v214, %v213
    %v262 = vpack.c.b16 %v216, %v215
    %v263 = vpack.c.b16 %v218, %v217
    %v264 = vpack.c.b16 %v220, %v219
    %v265 = vpack.c.b16 %v222, %v221
    %v266 = vpack.c.b16 %v224, %v223
    %v267 = vpack.c.b16 %v226, %v225
    %v268 = vpack.c.b16 %v228, %v227
    %v269 = vpack.c.b16 %v230, %v229
    %v270 = vpack.c.b16 %v232, %v231
    %v271 = vpack.c.b16 %v234, %v233
    %v272 = vpack.c.b16 %v236, %v235
    %v273 = vpack.c.b16 %v238, %v237
    %v274 = vpack.c.b16 %v240, %v239
    %v275 = vpack.c.b16 %v242, %v241
    %v276 = vpack.c.b16 %v244, %v243
    %v277 = vpack.c.b16 %v246, %v245
    %v278 = vpack.c.b16 %v248, %v247
    %v279 = vpack.c.b16 %v250, %v249
    %v280 = vpack.c.b16 %v252, %v251
    %v281 = vpack.c.b16 %v254, %v253
    %v282 = vpack.c.b16 %v256, %v255
    %v283 = vpack.c.b16 %v258, %v257
    %v284 = vpack.c.b16 %v260, %v259
    %309 = vmatpush.bf16.msra.mxu0 %v268
    %310 = vmatpush.bf16.msra.mxu0 %v267
    %311 = vmatpush.bf16.msra.mxu0 %v266
    %312 = vmatpush.bf16.msra.mxu0 %v265
    %313 = vmatpush.bf16.msra.mxu0 %v264
    %314 = vmatpush.bf16.msra.mxu0 %v263
    %315 = vmatpush.bf16.msra.mxu0 %v262
    %316 = vmatpush.bf16.msra.mxu0 %v261
    %317 = vmatmul.bf16.gmra.mxu0 %v153
    %v318 = vpop.f32.mrf.mxu0
    %v319 = vadd.f32 %v136, %v318
    %v320 = vpop.f32.mrf.mxu0
    %v321 = vadd.f32 %v136, %v320
    %322 = vmatmul.bf16.gmra.mxu0 %v156
    %v323 = vpop.f32.mrf.mxu0
    %v324 = vadd.f32 %v136, %v323
    %v325 = vpop.f32.mrf.mxu0
    %326 = vdwg.mxu0
    %327 = vmatpush.bf16.msra.mxu0 %v276
    %328 = vmatpush.bf16.msra.mxu0 %v275
    %329 = vmatpush.bf16.msra.mxu0 %v274
    %330 = vmatpush.bf16.msra.mxu0 %v273
    %331 = vmatpush.bf16.msra.mxu0 %v272
    %332 = vmatpush.bf16.msra.mxu0 %v271
    %333 = vmatpush.bf16.msra.mxu0 %v270
    %334 = vmatpush.bf16.msra.mxu0 %v269
    %335 = vmatmul.bf16.gmra.mxu0 %v154
    %v336 = vpop.f32.mrf.mxu0
    %v337 = vadd.f32 %v319, %v336
    %v338 = vpop.f32.mrf.mxu0
    %v339 = vadd.f32 %v321, %v338
    %340 = vmatmul.bf16.gmra.mxu0 %v157
    %v341 = vpop.f32.mrf.mxu0
    %v342 = vadd.f32 %v324, %v341
    %v343 = vpop.f32.mrf.mxu0
    %344 = vdwg.mxu0
    %345 = vmatpush.bf16.msra.mxu0 %v284
    %346 = vmatpush.bf16.msra.mxu0 %v283
    %347 = vmatpush.bf16.msra.mxu0 %v282
    %348 = vmatpush.bf16.msra.mxu0 %v281
    %349 = vmatpush.bf16.msra.mxu0 %v280
    %350 = vmatpush.bf16.msra.mxu0 %v279
    %351 = vmatpush.bf16.msra.mxu0 %v278
    %352 = vmatpush.bf16.msra.mxu0 %v277
    %353 = vmatmul.bf16.gmra.mxu0 %v155
    %v354 = vpop.f32.mrf.mxu0
    %v355 = vadd.f32 %v337, %v354
    %v356 = vpop.f32.mrf.mxu0
    %v357 = vadd.f32 %v339, %v356
    %358 = vmatmul.bf16.gmra.mxu0 %v158
    %v359 = vpop.f32.mrf.mxu0
    %v360 = vadd.f32 %v342, %v359
    %v361 = vpop.f32.mrf.mxu0
    %362 = vdwg.mxu0
    %v363 = vmul.f32 %v355, 0.5
    %v364 = vmul.f32 %v357, 0.5
    %v365 = vmul.f32 %v360, 0.5
    %v366 = vtanh.pop %v363
    %v367 = vtanh.pop %v364
    %v368 = vtanh.pop %v365
    %v369 = vadd.f32 %v366, 1.0
    %v370 = vadd.f32 %v367, 1.0
    %v371 = vadd.f32 %v368, 1.0
    %v372 = vmul.f32 %v369, 0.5
    %v373 = vmul.f32 %v370, 0.5
    %v374 = vmul.f32 %v371, 0.5
    %v378 = vrot.slane %v372, 2
    %v379 = vrot.slane %v372, 4
    %v380 = vrot.slane %v372, 6
    %v381 = vrot.slane %v373, 2
    %v382 = vrot.slane %v373, 4
    %v383 = vrot.slane %v373, 6
    %v384 = vrot.slane %v374, 2
    %v385 = vrot.slane %v374, 4
    %v386 = vrot.slane %v374, 6
    %vm396 = vcmask 1041408
    %v397 = vsel %vm396, %v372, -inf
    %v398 = vrot.slane %v397, 4
    %v399 = vmax.f32 %v397, %v398
    %v400 = vrot.slane %v399, 2
    %v401 = vmax.f32 %v399, %v400
    %v402 = vrot.slane %v401, 1
    %v403 = vmax.f32 %v401, %v402
    %v404 = vsel %vm396, %v378, -inf
    %v405 = vrot.slane %v404, 4
    %v406 = vmax.f32 %v404, %v405
    %v407 = vrot.slane %v406, 2
    %v408 = vmax.f32 %v406, %v407
    %v409 = vrot.slane %v408, 1
    %v410 = vmax.f32 %v408, %v409
    %v411 = vsel %vm396, %v379, -inf
    %v412 = vrot.slane %v411, 4
    %v413 = vmax.f32 %v411, %v412
    %v414 = vrot.slane %v413, 2
    %v415 = vmax.f32 %v413, %v414
    %v416 = vrot.slane %v415, 1
    %v417 = vmax.f32 %v415, %v416
    %v418 = vsel %vm396, %v380, -inf
    %v419 = vrot.slane %v418, 4
    %v420 = vmax.f32 %v418, %v419
    %v421 = vrot.slane %v420, 2
    %v422 = vmax.f32 %v420, %v421
    %v423 = vrot.slane %v422, 1
    %v424 = vmax.f32 %v422, %v423
    %v425 = vsel %vm396, %v373, -inf
    %v426 = vrot.slane %v425, 4
    %v427 = vmax.f32 %v425, %v426
    %v428 = vrot.slane %v427, 2
    %v429 = vmax.f32 %v427, %v428
    %v430 = vrot.slane %v429, 1
    %v431 = vmax.f32 %v429, %v430
    %v432 = vsel %vm396, %v381, -inf
    %v433 = vrot.slane %v432, 4
    %v434 = vmax.f32 %v432, %v433
    %v435 = vrot.slane %v434, 2
    %v436 = vmax.f32 %v434, %v435
    %v437 = vrot.slane %v436, 1
    %v438 = vmax.f32 %v436, %v437
    %v439 = vsel %vm396, %v382, -inf
    %v440 = vrot.slane %v439, 4
    %v441 = vmax.f32 %v439, %v440
    %v442 = vrot.slane %v441, 2
    %v443 = vmax.f32 %v441, %v442
    %v444 = vrot.slane %v443, 1
    %v445 = vmax.f32 %v443, %v444
    %v446 = vsel %vm396, %v383, -inf
    %v447 = vrot.slane %v446, 4
    %v448 = vmax.f32 %v446, %v447
    %v449 = vrot.slane %v448, 2
    %v450 = vmax.f32 %v448, %v449
    %v451 = vrot.slane %v450, 1
    %v452 = vmax.f32 %v450, %v451
    %v453 = vsel %vm396, %v374, -inf
    %v454 = vrot.slane %v453, 4
    %v455 = vmax.f32 %v453, %v454
    %v456 = vrot.slane %v455, 2
    %v457 = vmax.f32 %v455, %v456
    %v458 = vrot.slane %v457, 1
    %v459 = vmax.f32 %v457, %v458
    %v460 = vsel %vm396, %v384, -inf
    %v461 = vrot.slane %v460, 4
    %v462 = vmax.f32 %v460, %v461
    %v463 = vrot.slane %v462, 2
    %v464 = vmax.f32 %v462, %v463
    %v465 = vrot.slane %v464, 1
    %v466 = vmax.f32 %v464, %v465
    %v467 = vsel %vm396, %v385, -inf
    %v468 = vrot.slane %v467, 4
    %v469 = vmax.f32 %v467, %v468
    %v470 = vrot.slane %v469, 2
    %v471 = vmax.f32 %v469, %v470
    %v472 = vrot.slane %v471, 1
    %v473 = vmax.f32 %v471, %v472
    %v474 = vsel %vm396, %v386, -inf
    %v475 = vrot.slane %v474, 4
    %v476 = vmax.f32 %v474, %v475
    %v477 = vrot.slane %v476, 2
    %v478 = vmax.f32 %v476, %v477
    %v479 = vrot.slane %v478, 1
    %v480 = vmax.f32 %v478, %v479
    %v481 = vpack.c.bf16 %v403, %v403
    %v482 = vpack.c.bf16 %v410, %v410
    %v483 = vpack.c.bf16 %v417, %v417
    %v484 = vpack.c.bf16 %v424, %v424
    %v485 = vpack.c.bf16 %v431, %v431
    %v486 = vpack.c.bf16 %v438, %v438
    %v487 = vpack.c.bf16 %v445, %v445
    %v488 = vpack.c.bf16 %v452, %v452
    %v489 = vpack.c.bf16 %v459, %v459
    %v490 = vpack.c.bf16 %v466, %v466
    %v491 = vpack.c.bf16 %v473, %v473
    %v492 = vpack.c.bf16 %v480, %v480
    %v493 = vld [vmem:[%s3] sm:$0xf]
    %v494 = vld [vmem:[%s3 + $0x4] sm:$0xf]
    %v495 = vld [vmem:[%s3 + $0x8] sm:$0xf]
    %v496 = vld [vmem:[%s3 + $0xc] sm:$0xf]
    %v497 = vld [vmem:[%s3 + $0x10] sm:$0xf]
    %v498 = vld [vmem:[%s3 + $0x14] sm:$0xf]
    %v499 = vld [vmem:[%s3 + $0x18] sm:$0xf]
    %v500 = vld [vmem:[%s3 + $0x1c] sm:$0xf]
    %v501 = vld [vmem:[%s3 + $0x20] sm:$0xf]
    %v502 = vld [vmem:[%s3 + $0x24] sm:$0xf]
    %v503 = vld [vmem:[%s3 + $0x28] sm:$0xf]
    %v504 = vld [vmem:[%s3 + $0x2c] sm:$0xf]
    %v505 = vld [vmem:[%s3 + $0x30] sm:$0xf]
    %v506 = vld [vmem:[%s3 + $0x34] sm:$0xf]
    %v507 = vld [vmem:[%s3 + $0x38] sm:$0xf]
    %v508 = vld [vmem:[%s3 + $0x3c] sm:$0xf]
    %s509 = scalar_lea.vmem %s3, 64
    %v510 = vld [vmem:[%s509] sm:$0xf]
    %v511 = vld [vmem:[%s509 + $0x4] sm:$0xf]
    %v512 = vld [vmem:[%s509 + $0x8] sm:$0xf]
    %v513 = vld [vmem:[%s509 + $0xc] sm:$0xf]
    %v514 = vld [vmem:[%s509 + $0x10] sm:$0xf]
    %v515 = vld [vmem:[%s509 + $0x14] sm:$0xf]
    %v516 = vld [vmem:[%s509 + $0x18] sm:$0xf]
    %v517 = vld [vmem:[%s509 + $0x1c] sm:$0xf]
    %v518 = vld [vmem:[%s509 + $0x20] sm:$0xf]
    %v519 = vld [vmem:[%s509 + $0x24] sm:$0xf]
    %v520 = vld [vmem:[%s509 + $0x28] sm:$0xf]
    %v521 = vld [vmem:[%s509 + $0x2c] sm:$0xf]
    %v522 = vld [vmem:[%s509 + $0x30] sm:$0xf]
    %v523 = vld [vmem:[%s509 + $0x34] sm:$0xf]
    %v524 = vld [vmem:[%s509 + $0x38] sm:$0xf]
    %v525 = vld [vmem:[%s509 + $0x3c] sm:$0xf]
    %v534 = vperm.slane %v482, 0
    %v535 = vperm.slane %v483, 0
    %v536 = vperm.slane %v484, 0
    %v537 = vperm.slane %v485, 0
    %v538 = vperm.slane %v488, 0
    %v539 = vperm.slane %v489, 0
    %v540 = vperm.slane %v490, 0
    %v541 = vperm.slane %v491, 0
    %v542 = vunpack.c.l.b16 %v534
    %v543 = vunpack.c.l.b16 %v535
    %v544 = vunpack.c.l.b16 %v536
    %v545 = vunpack.c.l.b16 %v537
    %v546 = vunpack.c.l.b16 %v538
    %v547 = vunpack.c.l.b16 %v539
    %v548 = vunpack.c.l.b16 %v540
    %v549 = vunpack.c.l.b16 %v541
    %vm550 = vcmask 1041409
    %v551 = vsel %vm550, %v543, %v542
    %vm552 = vcmask 1042434
    %v553 = vsel %vm552, %v544, %v551
    %vm554 = vcmask 1043459
    %v555 = vsel %vm554, %v545, %v553
    %vm556 = vcmask 1044484
    %v557 = vsel %vm556, %v546, %v555
    %vm558 = vcmask 1045509
    %v559 = vsel %vm558, %v547, %v557
    %vm560 = vcmask 1046534
    %v561 = vsel %vm560, %v548, %v559
    %vm562 = vcmask 1047559
    %v563 = vsel %vm562, %v549, %v561
    %v564 = vpack.c.b16 %v563, %v563
    %v582 = vunpack.c.l.b16 %v510
    %v583 = vunpack.c.l.b16 %v511
    %v584 = vunpack.c.l.b16 %v512
    %v585 = vunpack.c.l.b16 %v513
    %v586 = vunpack.c.l.b16 %v514
    %v587 = vunpack.c.l.b16 %v515
    %v588 = vunpack.c.l.b16 %v516
    %v589 = vunpack.c.l.b16 %v517
    %v590 = vunpack.c.l.b16 %v518
    %v591 = vunpack.c.l.b16 %v519
    %v592 = vunpack.c.l.b16 %v520
    %v593 = vunpack.c.l.b16 %v521
    %v594 = vunpack.c.l.b16 %v522
    %v595 = vunpack.c.l.b16 %v523
    %v596 = vunpack.c.l.b16 %v524
    %v597 = vunpack.c.l.b16 %v525
    %v598 = vpack.c.b16 %v583, %v582
    %v599 = vpack.c.b16 %v585, %v584
    %v600 = vpack.c.b16 %v587, %v586
    %v601 = vpack.c.b16 %v589, %v588
    %v602 = vpack.c.b16 %v591, %v590
    %v603 = vpack.c.b16 %v593, %v592
    %v604 = vpack.c.b16 %v595, %v594
    %v605 = vpack.c.b16 %v597, %v596
    %614 = vmatpush.bf16.msra.mxu0 %v605
    %615 = vmatpush.bf16.msra.mxu0 %v604
    %616 = vmatpush.bf16.msra.mxu0 %v603
    %617 = vmatpush.bf16.msra.mxu0 %v602
    %618 = vmatpush.bf16.msra.mxu0 %v601
    %619 = vmatpush.bf16.msra.mxu0 %v600
    %620 = vmatpush.bf16.msra.mxu0 %v599
    %621 = vmatpush.bf16.msra.mxu0 %v598
    %622 = vmatmul.bf16.gmra.mxu0 %v564
    %v623 = vpop.f32.mrf.mxu0
    %v624 = vadd.f32 0.0, %v623
    %v625 = vpop.f32.mrf.mxu0
    %626 = vdwg.mxu0
    %v629 = vperm.slane %v481, 0
    %v630 = vperm.slane %v487, 0
    %v631 = vunpack.c.l.b16 %v629
    %v632 = vunpack.c.l.b16 %v630
    %v633 = vsel %vm550, %v542, %v631
    %v634 = vsel %vm552, %v543, %v633
    %v635 = vsel %vm554, %v544, %v634
    %v636 = vsel %vm556, %v632, %v635
    %v637 = vsel %vm558, %v546, %v636
    %v638 = vsel %vm560, %v547, %v637
    %v639 = vsel %vm562, %v548, %v638
    %v640 = vpack.c.b16 %v639, %v639
    %v658 = vunpack.c.l.b16 %v493
    %v659 = vunpack.c.l.b16 %v494
    %v660 = vunpack.c.l.b16 %v495
    %v661 = vunpack.c.l.b16 %v496
    %v662 = vunpack.c.l.b16 %v497
    %v663 = vunpack.c.l.b16 %v498
    %v664 = vunpack.c.l.b16 %v499
    %v665 = vunpack.c.l.b16 %v500
    %v666 = vunpack.c.l.b16 %v501
    %v667 = vunpack.c.l.b16 %v502
    %v668 = vunpack.c.l.b16 %v503
    %v669 = vunpack.c.l.b16 %v504
    %v670 = vunpack.c.l.b16 %v505
    %v671 = vunpack.c.l.b16 %v506
    %v672 = vunpack.c.l.b16 %v507
    %v673 = vunpack.c.l.b16 %v508
    %v674 = vpack.c.b16 %v659, %v658
    %v675 = vpack.c.b16 %v661, %v660
    %v676 = vpack.c.b16 %v663, %v662
    %v677 = vpack.c.b16 %v665, %v664
    %v678 = vpack.c.b16 %v667, %v666
    %v679 = vpack.c.b16 %v669, %v668
    %v680 = vpack.c.b16 %v671, %v670
    %v681 = vpack.c.b16 %v673, %v672
    %690 = vmatpush.bf16.msra.mxu0 %v681
    %691 = vmatpush.bf16.msra.mxu0 %v680
    %692 = vmatpush.bf16.msra.mxu0 %v679
    %693 = vmatpush.bf16.msra.mxu0 %v678
    %694 = vmatpush.bf16.msra.mxu0 %v677
    %695 = vmatpush.bf16.msra.mxu0 %v676
    %696 = vmatpush.bf16.msra.mxu0 %v675
    %697 = vmatpush.bf16.msra.mxu0 %v674
    %698 = vmatmul.bf16.gmra.mxu0 %v640
    %v699 = vpop.f32.mrf.mxu0
    %v700 = vadd.f32 %v624, %v699
    %v701 = vpop.f32.mrf.mxu0
    %702 = vdwg.mxu0
    %s703 = scalar_lea.vmem %s3, 128
    %v704 = vld [vmem:[%s703] sm:$0xf]
    %v705 = vld [vmem:[%s703 + $0x4] sm:$0xf]
    %v706 = vld [vmem:[%s703 + $0x8] sm:$0xf]
    %v707 = vld [vmem:[%s703 + $0xc] sm:$0xf]
    %v708 = vld [vmem:[%s703 + $0x10] sm:$0xf]
    %v709 = vld [vmem:[%s703 + $0x14] sm:$0xf]
    %v710 = vld [vmem:[%s703 + $0x18] sm:$0xf]
    %v711 = vld [vmem:[%s703 + $0x1c] sm:$0xf]
    %v712 = vld [vmem:[%s703 + $0x20] sm:$0xf]
    %v713 = vld [vmem:[%s703 + $0x24] sm:$0xf]
    %v714 = vld [vmem:[%s703 + $0x28] sm:$0xf]
    %v715 = vld [vmem:[%s703 + $0x2c] sm:$0xf]
    %v716 = vld [vmem:[%s703 + $0x30] sm:$0xf]
    %v717 = vld [vmem:[%s703 + $0x34] sm:$0xf]
    %v718 = vld [vmem:[%s703 + $0x38] sm:$0xf]
    %v719 = vld [vmem:[%s703 + $0x3c] sm:$0xf]
    %v722 = vperm.slane %v486, 0
    %v723 = vperm.slane %v492, 0
    %v724 = vunpack.c.l.b16 %v722
    %v725 = vunpack.c.l.b16 %v723
    %v726 = vsel %vm550, %v544, %v543
    %v727 = vsel %vm552, %v545, %v726
    %v728 = vsel %vm554, %v724, %v727
    %v729 = vsel %vm556, %v547, %v728
    %v730 = vsel %vm558, %v548, %v729
    %v731 = vsel %vm560, %v549, %v730
    %v732 = vsel %vm562, %v725, %v731
    %v733 = vpack.c.b16 %v732, %v732
    %v751 = vunpack.c.l.b16 %v704
    %v752 = vunpack.c.l.b16 %v705
    %v753 = vunpack.c.l.b16 %v706
    %v754 = vunpack.c.l.b16 %v707
    %v755 = vunpack.c.l.b16 %v708
    %v756 = vunpack.c.l.b16 %v709
    %v757 = vunpack.c.l.b16 %v710
    %v758 = vunpack.c.l.b16 %v711
    %v759 = vunpack.c.l.b16 %v712
    %v760 = vunpack.c.l.b16 %v713
    %v761 = vunpack.c.l.b16 %v714
    %v762 = vunpack.c.l.b16 %v715
    %v763 = vunpack.c.l.b16 %v716
    %v764 = vunpack.c.l.b16 %v717
    %v765 = vunpack.c.l.b16 %v718
    %v766 = vunpack.c.l.b16 %v719
    %v767 = vpack.c.b16 %v752, %v751
    %v768 = vpack.c.b16 %v754, %v753
    %v769 = vpack.c.b16 %v756, %v755
    %v770 = vpack.c.b16 %v758, %v757
    %v771 = vpack.c.b16 %v760, %v759
    %v772 = vpack.c.b16 %v762, %v761
    %v773 = vpack.c.b16 %v764, %v763
    %v774 = vpack.c.b16 %v766, %v765
    %783 = vmatpush.bf16.msra.mxu0 %v774
    %784 = vmatpush.bf16.msra.mxu0 %v773
    %785 = vmatpush.bf16.msra.mxu0 %v772
    %786 = vmatpush.bf16.msra.mxu0 %v771
    %787 = vmatpush.bf16.msra.mxu0 %v770
    %788 = vmatpush.bf16.msra.mxu0 %v769
    %789 = vmatpush.bf16.msra.mxu0 %v768
    %790 = vmatpush.bf16.msra.mxu0 %v767
    %791 = vmatmul.bf16.gmra.mxu0 %v733
    %v792 = vpop.f32.mrf.mxu0
    %v793 = vadd.f32 0.0, %v792
    %v794 = vpop.f32.mrf.mxu0
    %795 = vdwg.mxu0
    %v796 = vadd.f32 %v700, %v793
    %v797 = vld [vmem:[%s4] sm:$0x1]
    %v799 = vperm.slane %v797, 0
    %v801 = vadd.f32 %v796, %v799
    %v802 = vmul.f32 %v801, 0.5
    %v803 = vtanh.pop %v802
    %v804 = vadd.f32 %v803, 1.0
    %v805 = vmul.f32 %v804, 0.5
    %v807 = vrot.slane %v805, 2
    %v808 = vrot.slane %v805, 4
    %v809 = vrot.slane %v805, 6
    %v813 = vsel %vm396, %v805, -inf
    %v814 = vrot.slane %v813, 4
    %v815 = vmax.f32 %v813, %v814
    %v816 = vrot.slane %v815, 2
    %v817 = vmax.f32 %v815, %v816
    %v818 = vrot.slane %v817, 1
    %v819 = vmax.f32 %v817, %v818
    %v820 = vsel %vm396, %v807, -inf
    %v821 = vrot.slane %v820, 4
    %v822 = vmax.f32 %v820, %v821
    %v823 = vrot.slane %v822, 2
    %v824 = vmax.f32 %v822, %v823
    %v825 = vrot.slane %v824, 1
    %v826 = vmax.f32 %v824, %v825
    %v827 = vsel %vm396, %v808, -inf
    %v828 = vrot.slane %v827, 4
    %v829 = vmax.f32 %v827, %v828
    %v830 = vrot.slane %v829, 2
    %v831 = vmax.f32 %v829, %v830
    %v832 = vrot.slane %v831, 1
    %v833 = vmax.f32 %v831, %v832
    %v834 = vsel %vm396, %v809, -inf
    %v835 = vrot.slane %v834, 4
    %v836 = vmax.f32 %v834, %v835
    %v837 = vrot.slane %v836, 2
    %v838 = vmax.f32 %v836, %v837
    %v839 = vrot.slane %v838, 1
    %v840 = vmax.f32 %v838, %v839
    %v845 = vsel %vm550, %v826, %v819
    %v846 = vsel %vm550, %v840, %v833
    %v849 = vrot.slane %v846, 4
    %vm850 = vcmask 1047556
    %v851 = vsel %vm850, %v849, %v845
    %v853 = vunpack.c.l.s4 1934713408
    %v854 = vunpack.c.0.s8 %v853
    %v855 = vperm.slane %v851, %v854
    %v856 = vrot.slane %v855, 4
    %v857 = vsel %vm850, 0.0, %v856
    %v858 = vpack.c.bf16 %v855, %v855
    %v859 = vpack.c.bf16 %v857, %v857
    %v860 = vld [vmem:[#allocation5] sm:$0xff]
    %v861 = vld [vmem:[#allocation5 + $0x8] sm:$0xff]
    %v862 = vld [vmem:[#allocation5 + $0x10] sm:$0xff]
    %v863 = vld [vmem:[#allocation5 + $0x18] sm:$0xf]
    %v864 = vld [vmem:[#allocation5 + $0x1c] sm:$0xff]
    %v865 = vld [vmem:[#allocation5 + $0x24] sm:$0xff]
    %v866 = vld [vmem:[#allocation5 + $0x2c] sm:$0xff]
    %v867 = vld [vmem:[#allocation5 + $0x34] sm:$0xf]
    %v868 = vld [vmem:[#allocation5 + $0x38] sm:$0xff]
    %v869 = vld [vmem:[#allocation5 + $0x40] sm:$0xff]
    %v870 = vld [vmem:[#allocation5 + $0x48] sm:$0xff]
    %v871 = vld [vmem:[#allocation5 + $0x50] sm:$0xf]
    %v872 = vld [vmem:[#allocation5 + $0x54] sm:$0xff]
    %v873 = vld [vmem:[#allocation5 + $0x5c] sm:$0xff]
    %v874 = vld [vmem:[#allocation5 + $0x64] sm:$0xff]
    %v875 = vld [vmem:[#allocation5 + $0x6c] sm:$0xf]
    %v876 = vld [vmem:[#allocation5 + $0x70] sm:$0xff]
    %v877 = vld [vmem:[#allocation5 + $0x78] sm:$0xff]
    %v878 = vld [vmem:[#allocation5 + $0x80] sm:$0xff]
    %v879 = vld [vmem:[#allocation5 + $0x88] sm:$0xf]
    %v880 = vld [vmem:[#allocation5 + $0x8c] sm:$0xff]
    %v881 = vld [vmem:[#allocation5 + $0x94] sm:$0xff]
    %v882 = vld [vmem:[#allocation5 + $0x9c] sm:$0xff]
    %v883 = vld [vmem:[#allocation5 + $0xa4] sm:$0xf]
    %v884 = vld [vmem:[#allocation5 + $0xa8] sm:$0xff]
    %v885 = vld [vmem:[#allocation5 + $0xb0] sm:$0xff]
    %v886 = vld [vmem:[#allocation5 + $0xb8] sm:$0xff]
    %v887 = vld [vmem:[#allocation5 + $0xc0] sm:$0xf]
    %v888 = vld [vmem:[#allocation5 + $0xc4] sm:$0xff]
    %v889 = vld [vmem:[#allocation5 + $0xcc] sm:$0xff]
    %v890 = vld [vmem:[#allocation5 + $0xd4] sm:$0xff]
    %v891 = vld [vmem:[#allocation5 + $0xdc] sm:$0xf]
    %v892 = vld [vmem:[#allocation5 + $0xe0] sm:$0xff]
    %v893 = vld [vmem:[#allocation5 + $0xe8] sm:$0xff]
    %v894 = vld [vmem:[#allocation5 + $0xf0] sm:$0xff]
    %v895 = vld [vmem:[#allocation5 + $0xf8] sm:$0xf]
    %v896 = vld [vmem:[#allocation5 + $0xfc] sm:$0xff]
    %v897 = vld [vmem:[#allocation5 + $0x104] sm:$0xff]
    %v898 = vld [vmem:[#allocation5 + $0x10c] sm:$0xff]
    %v899 = vld [vmem:[#allocation5 + $0x114] sm:$0xf]
    %v900 = vld [vmem:[#allocation5 + $0x118] sm:$0xff]
    %v901 = vld [vmem:[#allocation5 + $0x120] sm:$0xff]
    %v902 = vld [vmem:[#allocation5 + $0x128] sm:$0xff]
    %v903 = vld [vmem:[#allocation5 + $0x130] sm:$0xf]
    %v904 = vld [vmem:[#allocation5 + $0x134] sm:$0xff]
    %v905 = vld [vmem:[#allocation5 + $0x13c] sm:$0xff]
    %v906 = vld [vmem:[#allocation5 + $0x144] sm:$0xff]
    %v907 = vld [vmem:[#allocation5 + $0x14c] sm:$0xf]
    %v908 = vld [vmem:[#allocation5 + $0x150] sm:$0xff]
    %v909 = vld [vmem:[#allocation5 + $0x158] sm:$0xff]
    %v910 = vld [vmem:[#allocation5 + $0x160] sm:$0xff]
    %v911 = vld [vmem:[#allocation5 + $0x168] sm:$0xf]
    %v912 = vld [vmem:[#allocation5 + $0x16c] sm:$0xff]
    %v913 = vld [vmem:[#allocation5 + $0x174] sm:$0xff]
    %v914 = vld [vmem:[#allocation5 + $0x17c] sm:$0xff]
    %v915 = vld [vmem:[#allocation5 + $0x184] sm:$0xf]
    %v916 = vld [vmem:[#allocation5 + $0x188] sm:$0xff]
    %v917 = vld [vmem:[#allocation5 + $0x190] sm:$0xff]
    %v918 = vld [vmem:[#allocation5 + $0x198] sm:$0xff]
    %v919 = vld [vmem:[#allocation5 + $0x1a0] sm:$0xf]
    %v920 = vld [vmem:[#allocation5 + $0x1a4] sm:$0xff]
    %v921 = vld [vmem:[#allocation5 + $0x1ac] sm:$0xff]
    %v922 = vld [vmem:[#allocation5 + $0x1b4] sm:$0xff]
    %v923 = vld [vmem:[#allocation5 + $0x1bc] sm:$0xf]
    %v924 = vld [vmem:[#allocation5 + $0x1c0] sm:$0xff]
    %v925 = vld [vmem:[#allocation5 + $0x1c8] sm:$0xff]
    %v926 = vld [vmem:[#allocation5 + $0x1d0] sm:$0xff]
    %v927 = vld [vmem:[#allocation5 + $0x1d8] sm:$0xf]
    %v928 = vld [vmem:[#allocation5 + $0x1dc] sm:$0xff]
    %v929 = vld [vmem:[#allocation5 + $0x1e4] sm:$0xff]
    %v930 = vld [vmem:[#allocation5 + $0x1ec] sm:$0xff]
    %v931 = vld [vmem:[#allocation5 + $0x1f4] sm:$0xf]
    %v932 = vld [vmem:[#allocation5 + $0x1f8] sm:$0xff]
    %v933 = vld [vmem:[#allocation5 + $0x200] sm:$0xff]
    %v934 = vld [vmem:[#allocation5 + $0x208] sm:$0xff]
    %v935 = vld [vmem:[#allocation5 + $0x210] sm:$0xf]
    %v936 = vld [vmem:[#allocation5 + $0x214] sm:$0xff]
    %v937 = vld [vmem:[#allocation5 + $0x21c] sm:$0xff]
    %v938 = vld [vmem:[#allocation5 + $0x224] sm:$0xff]
    %v939 = vld [vmem:[#allocation5 + $0x22c] sm:$0xf]
    %v940 = vld [vmem:[#allocation5 + $0x230] sm:$0xff]
    %v941 = vld [vmem:[#allocation5 + $0x238] sm:$0xff]
    %v942 = vld [vmem:[#allocation5 + $0x240] sm:$0xff]
    %v943 = vld [vmem:[#allocation5 + $0x248] sm:$0xf]
    %v944 = vld [vmem:[#allocation5 + $0x24c] sm:$0xff]
    %v945 = vld [vmem:[#allocation5 + $0x254] sm:$0xff]
    %v946 = vld [vmem:[#allocation5 + $0x25c] sm:$0xff]
    %v947 = vld [vmem:[#allocation5 + $0x264] sm:$0xf]
    %v948 = vld [vmem:[#allocation5 + $0x268] sm:$0xff]
    %v949 = vld [vmem:[#allocation5 + $0x270] sm:$0xff]
    %v950 = vld [vmem:[#allocation5 + $0x278] sm:$0xff]
    %v951 = vld [vmem:[#allocation5 + $0x280] sm:$0xf]
    %v952 = vld [vmem:[#allocation5 + $0x284] sm:$0xff]
    %v953 = vld [vmem:[#allocation5 + $0x28c] sm:$0xff]
    %v954 = vld [vmem:[#allocation5 + $0x294] sm:$0xff]
    %v955 = vld [vmem:[#allocation5 + $0x29c] sm:$0xf]
    %v956 = vld [vmem:[#allocation5 + $0x2a0] sm:$0xff]
    %v957 = vld [vmem:[#allocation5 + $0x2a8] sm:$0xff]
    %v958 = vld [vmem:[#allocation5 + $0x2b0] sm:$0xff]
    %v959 = vld [vmem:[#allocation5 + $0x2b8] sm:$0xf]
    %v960 = vld [vmem:[#allocation5 + $0x2bc] sm:$0xff]
    %v961 = vld [vmem:[#allocation5 + $0x2c4] sm:$0xff]
    %v962 = vld [vmem:[#allocation5 + $0x2cc] sm:$0xff]
    %v963 = vld [vmem:[#allocation5 + $0x2d4] sm:$0xf]
    %v964 = vld [vmem:[#allocation5 + $0x2d8] sm:$0xff]
    %v965 = vld [vmem:[#allocation5 + $0x2e0] sm:$0xff]
    %v966 = vld [vmem:[#allocation5 + $0x2e8] sm:$0xff]
    %v967 = vld [vmem:[#allocation5 + $0x2f0] sm:$0xf]
    %v968 = vld [vmem:[#allocation5 + $0x2f4] sm:$0xff]
    %v969 = vld [vmem:[#allocation5 + $0x2fc] sm:$0xff]
    %v970 = vld [vmem:[#allocation5 + $0x304] sm:$0xff]
    %v971 = vld [vmem:[#allocation5 + $0x30c] sm:$0xf]
    %v972 = vld [vmem:[#allocation5 + $0x310] sm:$0xff]
    %v973 = vld [vmem:[#allocation5 + $0x318] sm:$0xff]
    %v974 = vld [vmem:[#allocation5 + $0x320] sm:$0xff]
    %v975 = vld [vmem:[#allocation5 + $0x328] sm:$0xf]
    %v976 = vld [vmem:[#allocation5 + $0x32c] sm:$0xff]
    %v977 = vld [vmem:[#allocation5 + $0x334] sm:$0xff]
    %v978 = vld [vmem:[#allocation5 + $0x33c] sm:$0xff]
    %v979 = vld [vmem:[#allocation5 + $0x344] sm:$0xf]
    %v980 = vld [vmem:[#allocation5 + $0x348] sm:$0xff]
    %v981 = vld [vmem:[#allocation5 + $0x350] sm:$0xff]
    %v982 = vld [vmem:[#allocation5 + $0x358] sm:$0xff]
    %v983 = vld [vmem:[#allocation5 + $0x360] sm:$0xf]
    %v984 = vld [vmem:[#allocation5 + $0x364] sm:$0xff]
    %v985 = vld [vmem:[#allocation5 + $0x36c] sm:$0xff]
    %v986 = vld [vmem:[#allocation5 + $0x374] sm:$0xff]
    %v987 = vld [vmem:[#allocation5 + $0x37c] sm:$0xf]
    %v988 = vld [vmem:[%s6] sm:$0xff]
    %v990 = vperm.slane %v988, 0
    %v991 = vperm.slane %v988, 1
    %v992 = vperm.slane %v988, 2
    %v993 = vperm.slane %v988, 3
    %v994 = vperm.slane %v988, 4
    %v995 = vperm.slane %v988, 5
    %v996 = vperm.slane %v988, 6
    %v1132 = vunpack.c.l.b16 %v860
    %v1133 = vunpack.c.h.b16 %v860
    %v1134 = vunpack.c.l.b16 %v861
    %v1135 = vunpack.c.h.b16 %v861
    %v1136 = vunpack.c.l.b16 %v862
    %v1137 = vunpack.c.h.b16 %v862
    %v1138 = vunpack.c.l.b16 %v863
    %v1139 = vunpack.c.l.b16 %v864
    %v1140 = vunpack.c.h.b16 %v864
    %v1141 = vunpack.c.l.b16 %v865
    %v1142 = vunpack.c.h.b16 %v865
    %v1143 = vunpack.c.l.b16 %v866
    %v1144 = vunpack.c.h.b16 %v866
    %v1145 = vunpack.c.l.b16 %v867
    %v1146 = vunpack.c.l.b16 %v868
    %v1147 = vunpack.c.h.b16 %v868
    %v1148 = vunpack.c.l.b16 %v869
    %v1149 = vunpack.c.h.b16 %v869
    %v1150 = vunpack.c.l.b16 %v870
    %v1151 = vunpack.c.h.b16 %v870
    %v1152 = vunpack.c.l.b16 %v871
    %v1153 = vunpack.c.l.b16 %v872
    %v1154 = vunpack.c.h.b16 %v872
    %v1155 = vunpack.c.l.b16 %v873
    %v1156 = vunpack.c.h.b16 %v873
    %v1157 = vunpack.c.l.b16 %v874
    %v1158 = vunpack.c.h.b16 %v874
    %v1159 = vunpack.c.l.b16 %v875
    %v1160 = vunpack.c.l.b16 %v876
    %v1161 = vunpack.c.h.b16 %v876
    %v1162 = vunpack.c.l.b16 %v877
    %v1163 = vunpack.c.h.b16 %v877
    %v1164 = vunpack.c.l.b16 %v878
    %v1165 = vunpack.c.h.b16 %v878
    %v1166 = vunpack.c.l.b16 %v879
    %v1167 = vunpack.c.l.b16 %v880
    %v1168 = vunpack.c.h.b16 %v880
    %v1169 = vunpack.c.l.b16 %v881
    %v1170 = vunpack.c.h.b16 %v881
    %v1171 = vunpack.c.l.b16 %v882
    %v1172 = vunpack.c.h.b16 %v882
    %v1173 = vunpack.c.l.b16 %v883
    %v1174 = vunpack.c.l.b16 %v884
    %v1175 = vunpack.c.h.b16 %v884
    %v1176 = vunpack.c.l.b16 %v885
    %v1177 = vunpack.c.h.b16 %v885
    %v1178 = vunpack.c.l.b16 %v886
    %v1179 = vunpack.c.h.b16 %v886
    %v1180 = vunpack.c.l.b16 %v887
    %v1181 = vunpack.c.l.b16 %v888
    %v1182 = vunpack.c.h.b16 %v888
    %v1183 = vunpack.c.l.b16 %v889
    %v1184 = vunpack.c.h.b16 %v889
    %v1185 = vunpack.c.l.b16 %v890
    %v1186 = vunpack.c.h.b16 %v890
    %v1187 = vunpack.c.l.b16 %v891
    %v1188 = vunpack.c.l.b16 %v892
    %v1189 = vunpack.c.h.b16 %v892
    %v1190 = vunpack.c.l.b16 %v893
    %v1191 = vunpack.c.h.b16 %v893
    %v1192 = vunpack.c.l.b16 %v894
    %v1193 = vunpack.c.h.b16 %v894
    %v1194 = vunpack.c.l.b16 %v895
    %v1195 = vunpack.c.l.b16 %v896
    %v1196 = vunpack.c.h.b16 %v896
    %v1197 = vunpack.c.l.b16 %v897
    %v1198 = vunpack.c.h.b16 %v897
    %v1199 = vunpack.c.l.b16 %v898
    %v1200 = vunpack.c.h.b16 %v898
    %v1201 = vunpack.c.l.b16 %v899
    %v1202 = vunpack.c.l.b16 %v900
    %v1203 = vunpack.c.h.b16 %v900
    %v1204 = vunpack.c.l.b16 %v901
    %v1205 = vunpack.c.h.b16 %v901
    %v1206 = vunpack.c.l.b16 %v902
    %v1207 = vunpack.c.h.b16 %v902
    %v1208 = vunpack.c.l.b16 %v903
    %v1209 = vunpack.c.l.b16 %v904
    %v1210 = vunpack.c.h.b16 %v904
    %v1211 = vunpack.c.l.b16 %v905
    %v1212 = vunpack.c.h.b16 %v905
    %v1213 = vunpack.c.l.b16 %v906
    %v1214 = vunpack.c.h.b16 %v906
    %v1215 = vunpack.c.l.b16 %v907
    %v1216 = vunpack.c.l.b16 %v908
    %v1217 = vunpack.c.h.b16 %v908
    %v1218 = vunpack.c.l.b16 %v909
    %v1219 = vunpack.c.h.b16 %v909
    %v1220 = vunpack.c.l.b16 %v910
    %v1221 = vunpack.c.h.b16 %v910
    %v1222 = vunpack.c.l.b16 %v911
    %v1223 = vunpack.c.l.b16 %v912
    %v1224 = vunpack.c.h.b16 %v912
    %v1225 = vunpack.c.l.b16 %v913
    %v1226 = vunpack.c.h.b16 %v913
    %v1227 = vunpack.c.l.b16 %v914
    %v1228 = vunpack.c.h.b16 %v914
    %v1229 = vunpack.c.l.b16 %v915
    %v1230 = vunpack.c.l.b16 %v916
    %v1231 = vunpack.c.h.b16 %v916
    %v1232 = vunpack.c.l.b16 %v917
    %v1233 = vunpack.c.h.b16 %v917
    %v1234 = vunpack.c.l.b16 %v918
    %v1235 = vunpack.c.h.b16 %v918
    %v1236 = vunpack.c.l.b16 %v919
    %v1237 = vunpack.c.l.b16 %v920
    %v1238 = vunpack.c.h.b16 %v920
    %v1239 = vunpack.c.l.b16 %v921
    %v1240 = vunpack.c.h.b16 %v921
    %v1241 = vunpack.c.l.b16 %v922
    %v1242 = vunpack.c.h.b16 %v922
    %v1243 = vunpack.c.l.b16 %v923
    %v1244 = vunpack.c.l.b16 %v924
    %v1245 = vunpack.c.h.b16 %v924
    %v1246 = vunpack.c.l.b16 %v925
    %v1247 = vunpack.c.h.b16 %v925
    %v1248 = vunpack.c.l.b16 %v926
    %v1249 = vunpack.c.h.b16 %v926
    %v1250 = vunpack.c.l.b16 %v927
    %v1251 = vunpack.c.l.b16 %v928
    %v1252 = vunpack.c.h.b16 %v928
    %v1253 = vunpack.c.l.b16 %v929
    %v1254 = vunpack.c.h.b16 %v929
    %v1255 = vunpack.c.l.b16 %v930
    %v1256 = vunpack.c.h.b16 %v930
    %v1257 = vunpack.c.l.b16 %v931
    %v1258 = vunpack.c.l.b16 %v932
    %v1259 = vunpack.c.h.b16 %v932
    %v1260 = vunpack.c.l.b16 %v933
    %v1261 = vunpack.c.h.b16 %v933
    %v1262 = vunpack.c.l.b16 %v934
    %v1263 = vunpack.c.h.b16 %v934
    %v1264 = vunpack.c.l.b16 %v935
    %v1265 = vunpack.c.l.b16 %v936
    %v1266 = vunpack.c.h.b16 %v936
    %v1267 = vunpack.c.l.b16 %v937
    %v1268 = vunpack.c.h.b16 %v937
    %v1269 = vunpack.c.l.b16 %v938
    %v1270 = vunpack.c.h.b16 %v938
    %v1271 = vunpack.c.l.b16 %v939
    %v1272 = vunpack.c.l.b16 %v940
    %v1273 = vunpack.c.h.b16 %v940
    %v1274 = vunpack.c.l.b16 %v941
    %v1275 = vunpack.c.h.b16 %v941
    %v1276 = vunpack.c.l.b16 %v942
    %v1277 = vunpack.c.h.b16 %v942
    %v1278 = vunpack.c.l.b16 %v943
    %v1279 = vunpack.c.l.b16 %v944
    %v1280 = vunpack.c.h.b16 %v944
    %v1281 = vunpack.c.l.b16 %v945
    %v1282 = vunpack.c.h.b16 %v945
    %v1283 = vunpack.c.l.b16 %v946
    %v1284 = vunpack.c.h.b16 %v946
    %v1285 = vunpack.c.l.b16 %v947
    %v1286 = vunpack.c.l.b16 %v948
    %v1287 = vunpack.c.h.b16 %v948
    %v1288 = vunpack.c.l.b16 %v949
    %v1289 = vunpack.c.h.b16 %v949
    %v1290 = vunpack.c.l.b16 %v950
    %v1291 = vunpack.c.h.b16 %v950
    %v1292 = vunpack.c.l.b16 %v951
    %v1293 = vunpack.c.l.b16 %v952
    %v1294 = vunpack.c.h.b16 %v952
    %v1295 = vunpack.c.l.b16 %v953
    %v1296 = vunpack.c.h.b16 %v953
    %v1297 = vunpack.c.l.b16 %v954
    %v1298 = vunpack.c.h.b16 %v954
    %v1299 = vunpack.c.l.b16 %v955
    %v1300 = vunpack.c.l.b16 %v956
    %v1301 = vunpack.c.h.b16 %v956
    %v1302 = vunpack.c.l.b16 %v957
    %v1303 = vunpack.c.h.b16 %v957
    %v1304 = vunpack.c.l.b16 %v958
    %v1305 = vunpack.c.h.b16 %v958
    %v1306 = vunpack.c.l.b16 %v959
    %v1307 = vunpack.c.l.b16 %v960
    %v1308 = vunpack.c.h.b16 %v960
    %v1309 = vunpack.c.l.b16 %v961
    %v1310 = vunpack.c.h.b16 %v961
    %v1311 = vunpack.c.l.b16 %v962
    %v1312 = vunpack.c.h.b16 %v962
    %v1313 = vunpack.c.l.b16 %v963
    %v1314 = vunpack.c.l.b16 %v964
    %v1315 = vunpack.c.h.b16 %v964
    %v1316 = vunpack.c.l.b16 %v965
    %v1317 = vunpack.c.h.b16 %v965
    %v1318 = vunpack.c.l.b16 %v966
    %v1319 = vunpack.c.h.b16 %v966
    %v1320 = vunpack.c.l.b16 %v967
    %v1321 = vunpack.c.l.b16 %v968
    %v1322 = vunpack.c.h.b16 %v968
    %v1323 = vunpack.c.l.b16 %v969
    %v1324 = vunpack.c.h.b16 %v969
    %v1325 = vunpack.c.l.b16 %v970
    %v1326 = vunpack.c.h.b16 %v970
    %v1327 = vunpack.c.l.b16 %v971
    %v1328 = vunpack.c.l.b16 %v972
    %v1329 = vunpack.c.h.b16 %v972
    %v1330 = vunpack.c.l.b16 %v973
    %v1331 = vunpack.c.h.b16 %v973
    %v1332 = vunpack.c.l.b16 %v974
    %v1333 = vunpack.c.h.b16 %v974
    %v1334 = vunpack.c.l.b16 %v975
    %v1335 = vunpack.c.l.b16 %v976
    %v1336 = vunpack.c.h.b16 %v976
    %v1337 = vunpack.c.l.b16 %v977
    %v1338 = vunpack.c.h.b16 %v977
    %v1339 = vunpack.c.l.b16 %v978
    %v1340 = vunpack.c.h.b16 %v978
    %v1341 = vunpack.c.l.b16 %v979
    %v1342 = vunpack.c.l.b16 %v980
    %v1343 = vunpack.c.h.b16 %v980
    %v1344 = vunpack.c.l.b16 %v981
    %v1345 = vunpack.c.h.b16 %v981
    %v1346 = vunpack.c.l.b16 %v982
    %v1347 = vunpack.c.h.b16 %v982
    %v1348 = vunpack.c.l.b16 %v983
    %v1349 = vunpack.c.l.b16 %v984
    %v1350 = vunpack.c.h.b16 %v984
    %v1351 = vunpack.c.l.b16 %v985
    %v1352 = vunpack.c.h.b16 %v985
    %v1353 = vunpack.c.l.b16 %v986
    %v1354 = vunpack.c.h.b16 %v986
    %v1355 = vunpack.c.l.b16 %v987
    %v1356 = vpack.c.b16 %v1139, %v1132
    %v1357 = vpack.c.b16 %v1140, %v1133
    %v1358 = vpack.c.b16 %v1141, %v1134
    %v1359 = vpack.c.b16 %v1142, %v1135
    %v1360 = vpack.c.b16 %v1143, %v1136
    %v1361 = vpack.c.b16 %v1144, %v1137
    %v1362 = vpack.c.b16 %v1145, %v1138
    %v1363 = vpack.c.b16 %v1153, %v1146
    %v1364 = vpack.c.b16 %v1154, %v1147
    %v1365 = vpack.c.b16 %v1155, %v1148
    %v1366 = vpack.c.b16 %v1156, %v1149
    %v1367 = vpack.c.b16 %v1157, %v1150
    %v1368 = vpack.c.b16 %v1158, %v1151
    %v1369 = vpack.c.b16 %v1159, %v1152
    %v1370 = vpack.c.b16 %v1167, %v1160
    %v1371 = vpack.c.b16 %v1168, %v1161
    %v1372 = vpack.c.b16 %v1169, %v1162
    %v1373 = vpack.c.b16 %v1170, %v1163
    %v1374 = vpack.c.b16 %v1171, %v1164
    %v1375 = vpack.c.b16 %v1172, %v1165
    %v1376 = vpack.c.b16 %v1173, %v1166
    %v1377 = vpack.c.b16 %v1181, %v1174
    %v1378 = vpack.c.b16 %v1182, %v1175
    %v1379 = vpack.c.b16 %v1183, %v1176
    %v1380 = vpack.c.b16 %v1184, %v1177
    %v1381 = vpack.c.b16 %v1185, %v1178
    %v1382 = vpack.c.b16 %v1186, %v1179
    %v1383 = vpack.c.b16 %v1187, %v1180
    %v1384 = vpack.c.b16 %v1195, %v1188
    %v1385 = vpack.c.b16 %v1196, %v1189
    %v1386 = vpack.c.b16 %v1197, %v1190
    %v1387 = vpack.c.b16 %v1198, %v1191
    %v1388 = vpack.c.b16 %v1199, %v1192
    %v1389 = vpack.c.b16 %v1200, %v1193
    %v1390 = vpack.c.b16 %v1201, %v1194
    %v1391 = vpack.c.b16 %v1209, %v1202
    %v1392 = vpack.c.b16 %v1210, %v1203
    %v1393 = vpack.c.b16 %v1211, %v1204
    %v1394 = vpack.c.b16 %v1212, %v1205
    %v1395 = vpack.c.b16 %v1213, %v1206
    %v1396 = vpack.c.b16 %v1214, %v1207
    %v1397 = vpack.c.b16 %v1215, %v1208
    %v1398 = vpack.c.b16 %v1223, %v1216
    %v1399 = vpack.c.b16 %v1224, %v1217
    %v1400 = vpack.c.b16 %v1225, %v1218
    %v1401 = vpack.c.b16 %v1226, %v1219
    %v1402 = vpack.c.b16 %v1227, %v1220
    %v1403 = vpack.c.b16 %v1228, %v1221
    %v1404 = vpack.c.b16 %v1229, %v1222
    %v1405 = vpack.c.b16 %v1237, %v1230
    %v1406 = vpack.c.b16 %v1238, %v1231
    %v1407 = vpack.c.b16 %v1239, %v1232
    %v1408 = vpack.c.b16 %v1240, %v1233
    %v1409 = vpack.c.b16 %v1241, %v1234
    %v1410 = vpack.c.b16 %v1242, %v1235
    %v1411 = vpack.c.b16 %v1243, %v1236
    %v1412 = vpack.c.b16 %v1251, %v1244
    %v1413 = vpack.c.b16 %v1252, %v1245
    %v1414 = vpack.c.b16 %v1253, %v1246
    %v1415 = vpack.c.b16 %v1254, %v1247
    %v1416 = vpack.c.b16 %v1255, %v1248
    %v1417 = vpack.c.b16 %v1256, %v1249
    %v1418 = vpack.c.b16 %v1257, %v1250
    %v1419 = vpack.c.b16 %v1265, %v1258
    %v1420 = vpack.c.b16 %v1266, %v1259
    %v1421 = vpack.c.b16 %v1267, %v1260
    %v1422 = vpack.c.b16 %v1268, %v1261
    %v1423 = vpack.c.b16 %v1269, %v1262
    %v1424 = vpack.c.b16 %v1270, %v1263
    %v1425 = vpack.c.b16 %v1271, %v1264
    %v1426 = vpack.c.b16 %v1279, %v1272
    %v1427 = vpack.c.b16 %v1280, %v1273
    %v1428 = vpack.c.b16 %v1281, %v1274
    %v1429 = vpack.c.b16 %v1282, %v1275
    %v1430 = vpack.c.b16 %v1283, %v1276
    %v1431 = vpack.c.b16 %v1284, %v1277
    %v1432 = vpack.c.b16 %v1285, %v1278
    %v1433 = vpack.c.b16 %v1293, %v1286
    %v1434 = vpack.c.b16 %v1294, %v1287
    %v1435 = vpack.c.b16 %v1295, %v1288
    %v1436 = vpack.c.b16 %v1296, %v1289
    %v1437 = vpack.c.b16 %v1297, %v1290
    %v1438 = vpack.c.b16 %v1298, %v1291
    %v1439 = vpack.c.b16 %v1299, %v1292
    %v1440 = vpack.c.b16 %v1307, %v1300
    %v1441 = vpack.c.b16 %v1308, %v1301
    %v1442 = vpack.c.b16 %v1309, %v1302
    %v1443 = vpack.c.b16 %v1310, %v1303
    %v1444 = vpack.c.b16 %v1311, %v1304
    %v1445 = vpack.c.b16 %v1312, %v1305
    %v1446 = vpack.c.b16 %v1313, %v1306
    %v1447 = vpack.c.b16 %v1321, %v1314
    %v1448 = vpack.c.b16 %v1322, %v1315
    %v1449 = vpack.c.b16 %v1323, %v1316
    %v1450 = vpack.c.b16 %v1324, %v1317
    %v1451 = vpack.c.b16 %v1325, %v1318
    %v1452 = vpack.c.b16 %v1326, %v1319
    %v1453 = vpack.c.b16 %v1327, %v1320
    %v1454 = vpack.c.b16 %v1335, %v1328
    %v1455 = vpack.c.b16 %v1336, %v1329
    %v1456 = vpack.c.b16 %v1337, %v1330
    %v1457 = vpack.c.b16 %v1338, %v1331
    %v1458 = vpack.c.b16 %v1339, %v1332
    %v1459 = vpack.c.b16 %v1340, %v1333
    %v1460 = vpack.c.b16 %v1341, %v1334
    %v1461 = vpack.c.b16 %v1349, %v1342
    %v1462 = vpack.c.b16 %v1350, %v1343
    %v1463 = vpack.c.b16 %v1351, %v1344
    %v1464 = vpack.c.b16 %v1352, %v1345
    %v1465 = vpack.c.b16 %v1353, %v1346
    %v1466 = vpack.c.b16 %v1354, %v1347
    %v1467 = vpack.c.b16 %v1355, %v1348
    %1580 = vmatpush.bf16.msra.mxu0 %v1405
    %1581 = vmatpush.bf16.msra.mxu0 %v1398
    %1582 = vmatpush.bf16.msra.mxu0 %v1391
    %1583 = vmatpush.bf16.msra.mxu0 %v1384
    %1584 = vmatpush.bf16.msra.mxu0 %v1377
    %1585 = vmatpush.bf16.msra.mxu0 %v1370
    %1586 = vmatpush.bf16.msra.mxu0 %v1363
    %1587 = vmatpush.bf16.msra.mxu0 %v1356
    %1588 = vmatmul.bf16.gmra.mxu0 %v858
    %v1589 = vpop.f32.mrf.mxu0
    %v1590 = vadd.f32 %v990, %v1589
    %v1591 = vpop.f32.mrf.mxu0
    %1592 = vdwg.mxu0
    %1593 = vmatpush.bf16.msra.mxu0 %v1461
    %1594 = vmatpush.bf16.msra.mxu0 %v1454
    %1595 = vmatpush.bf16.msra.mxu0 %v1447
    %1596 = vmatpush.bf16.msra.mxu0 %v1440
    %1597 = vmatpush.bf16.msra.mxu0 %v1433
    %1598 = vmatpush.bf16.msra.mxu0 %v1426
    %1599 = vmatpush.bf16.msra.mxu0 %v1419
    %1600 = vmatpush.bf16.msra.mxu0 %v1412
    %1601 = vmatmul.bf16.gmra.mxu0 %v859
    %v1602 = vpop.f32.mrf.mxu0
    %v1603 = vadd.f32 %v1590, %v1602
    %v1604 = vpop.f32.mrf.mxu0
    %1605 = vdwg.mxu0
    %1606 = vmatpush.bf16.msra.mxu0 %v1406
    %1607 = vmatpush.bf16.msra.mxu0 %v1399
    %1608 = vmatpush.bf16.msra.mxu0 %v1392
    %1609 = vmatpush.bf16.msra.mxu0 %v1385
    %1610 = vmatpush.bf16.msra.mxu0 %v1378
    %1611 = vmatpush.bf16.msra.mxu0 %v1371
    %1612 = vmatpush.bf16.msra.mxu0 %v1364
    %1613 = vmatpush.bf16.msra.mxu0 %v1357
    %1614 = vmatmul.bf16.gmra.mxu0 %v858
    %v1615 = vpop.f32.mrf.mxu0
    %v1616 = vadd.f32 %v991, %v1615
    %v1617 = vpop.f32.mrf.mxu0
    %1618 = vdwg.mxu0
    %1619 = vmatpush.bf16.msra.mxu0 %v1462
    %1620 = vmatpush.bf16.msra.mxu0 %v1455
    %1621 = vmatpush.bf16.msra.mxu0 %v1448
    %1622 = vmatpush.bf16.msra.mxu0 %v1441
    %1623 = vmatpush.bf16.msra.mxu0 %v1434
    %1624 = vmatpush.bf16.msra.mxu0 %v1427
    %1625 = vmatpush.bf16.msra.mxu0 %v1420
    %1626 = vmatpush.bf16.msra.mxu0 %v1413
    %1627 = vmatmul.bf16.gmra.mxu0 %v859
    %v1628 = vpop.f32.mrf.mxu0
    %v1629 = vadd.f32 %v1616, %v1628
    %v1630 = vpop.f32.mrf.mxu0
    %1631 = vdwg.mxu0
    %1632 = vmatpush.bf16.msra.mxu0 %v1407
    %1633 = vmatpush.bf16.msra.mxu0 %v1400
    %1634 = vmatpush.bf16.msra.mxu0 %v1393
    %1635 = vmatpush.bf16.msra.mxu0 %v1386
    %1636 = vmatpush.bf16.msra.mxu0 %v1379
    %1637 = vmatpush.bf16.msra.mxu0 %v1372
    %1638 = vmatpush.bf16.msra.mxu0 %v1365
    %1639 = vmatpush.bf16.msra.mxu0 %v1358
    %1640 = vmatmul.bf16.gmra.mxu0 %v858
    %v1641 = vpop.f32.mrf.mxu0
    %v1642 = vadd.f32 %v992, %v1641
    %v1643 = vpop.f32.mrf.mxu0
    %1644 = vdwg.mxu0
    %1645 = vmatpush.bf16.msra.mxu0 %v1463
    %1646 = vmatpush.bf16.msra.mxu0 %v1456
    %1647 = vmatpush.bf16.msra.mxu0 %v1449
    %1648 = vmatpush.bf16.msra.mxu0 %v1442
    %1649 = vmatpush.bf16.msra.mxu0 %v1435
    %1650 = vmatpush.bf16.msra.mxu0 %v1428
    %1651 = vmatpush.bf16.msra.mxu0 %v1421
    %1652 = vmatpush.bf16.msra.mxu0 %v1414
    %1653 = vmatmul.bf16.gmra.mxu0 %v859
    %v1654 = vpop.f32.mrf.mxu0
    %v1655 = vadd.f32 %v1642, %v1654
    %v1656 = vpop.f32.mrf.mxu0
    %1657 = vdwg.mxu0
    %1658 = vmatpush.bf16.msra.mxu0 %v1408
    %1659 = vmatpush.bf16.msra.mxu0 %v1401
    %1660 = vmatpush.bf16.msra.mxu0 %v1394
    %1661 = vmatpush.bf16.msra.mxu0 %v1387
    %1662 = vmatpush.bf16.msra.mxu0 %v1380
    %1663 = vmatpush.bf16.msra.mxu0 %v1373
    %1664 = vmatpush.bf16.msra.mxu0 %v1366
    %1665 = vmatpush.bf16.msra.mxu0 %v1359
    %1666 = vmatmul.bf16.gmra.mxu0 %v858
    %v1667 = vpop.f32.mrf.mxu0
    %v1668 = vadd.f32 %v993, %v1667
    %v1669 = vpop.f32.mrf.mxu0
    %1670 = vdwg.mxu0
    %1671 = vmatpush.bf16.msra.mxu0 %v1464
    %1672 = vmatpush.bf16.msra.mxu0 %v1457
    %1673 = vmatpush.bf16.msra.mxu0 %v1450
    %1674 = vmatpush.bf16.msra.mxu0 %v1443
    %1675 = vmatpush.bf16.msra.mxu0 %v1436
    %1676 = vmatpush.bf16.msra.mxu0 %v1429
    %1677 = vmatpush.bf16.msra.mxu0 %v1422
    %1678 = vmatpush.bf16.msra.mxu0 %v1415
    %1679 = vmatmul.bf16.gmra.mxu0 %v859
    %v1680 = vpop.f32.mrf.mxu0
    %v1681 = vadd.f32 %v1668, %v1680
    %v1682 = vpop.f32.mrf.mxu0
    %1683 = vdwg.mxu0
    %1684 = vmatpush.bf16.msra.mxu0 %v1409
    %1685 = vmatpush.bf16.msra.mxu0 %v1402
    %1686 = vmatpush.bf16.msra.mxu0 %v1395
    %1687 = vmatpush.bf16.msra.mxu0 %v1388
    %1688 = vmatpush.bf16.msra.mxu0 %v1381
    %1689 = vmatpush.bf16.msra.mxu0 %v1374
    %1690 = vmatpush.bf16.msra.mxu0 %v1367
    %1691 = vmatpush.bf16.msra.mxu0 %v1360
    %1692 = vmatmul.bf16.gmra.mxu0 %v858
    %v1693 = vpop.f32.mrf.mxu0
    %v1694 = vadd.f32 %v994, %v1693
    %v1695 = vpop.f32.mrf.mxu0
    %1696 = vdwg.mxu0
    %1697 = vmatpush.bf16.msra.mxu0 %v1465
    %1698 = vmatpush.bf16.msra.mxu0 %v1458
    %1699 = vmatpush.bf16.msra.mxu0 %v1451
    %1700 = vmatpush.bf16.msra.mxu0 %v1444
    %1701 = vmatpush.bf16.msra.mxu0 %v1437
    %1702 = vmatpush.bf16.msra.mxu0 %v1430
    %1703 = vmatpush.bf16.msra.mxu0 %v1423
    %1704 = vmatpush.bf16.msra.mxu0 %v1416
    %1705 = vmatmul.bf16.gmra.mxu0 %v859
    %v1706 = vpop.f32.mrf.mxu0
    %v1707 = vadd.f32 %v1694, %v1706
    %v1708 = vpop.f32.mrf.mxu0
    %1709 = vdwg.mxu0
    %1710 = vmatpush.bf16.msra.mxu0 %v1410
    %1711 = vmatpush.bf16.msra.mxu0 %v1403
    %1712 = vmatpush.bf16.msra.mxu0 %v1396
    %1713 = vmatpush.bf16.msra.mxu0 %v1389
    %1714 = vmatpush.bf16.msra.mxu0 %v1382
    %1715 = vmatpush.bf16.msra.mxu0 %v1375
    %1716 = vmatpush.bf16.msra.mxu0 %v1368
    %1717 = vmatpush.bf16.msra.mxu0 %v1361
    %1718 = vmatmul.bf16.gmra.mxu0 %v858
    %v1719 = vpop.f32.mrf.mxu0
    %v1720 = vadd.f32 %v995, %v1719
    %v1721 = vpop.f32.mrf.mxu0
    %1722 = vdwg.mxu0
    %1723 = vmatpush.bf16.msra.mxu0 %v1466
    %1724 = vmatpush.bf16.msra.mxu0 %v1459
    %1725 = vmatpush.bf16.msra.mxu0 %v1452
    %1726 = vmatpush.bf16.msra.mxu0 %v1445
    %1727 = vmatpush.bf16.msra.mxu0 %v1438
    %1728 = vmatpush.bf16.msra.mxu0 %v1431
    %1729 = vmatpush.bf16.msra.mxu0 %v1424
    %1730 = vmatpush.bf16.msra.mxu0 %v1417
    %1731 = vmatmul.bf16.gmra.mxu0 %v859
    %v1732 = vpop.f32.mrf.mxu0
    %v1733 = vadd.f32 %v1720, %v1732
    %v1734 = vpop.f32.mrf.mxu0
    %1735 = vdwg.mxu0
    %1736 = vmatpush.bf16.msra.mxu0 %v1411
    %1737 = vmatpush.bf16.msra.mxu0 %v1404
    %1738 = vmatpush.bf16.msra.mxu0 %v1397
    %1739 = vmatpush.bf16.msra.mxu0 %v1390
    %1740 = vmatpush.bf16.msra.mxu0 %v1383
    %1741 = vmatpush.bf16.msra.mxu0 %v1376
    %1742 = vmatpush.bf16.msra.mxu0 %v1369
    %1743 = vmatpush.bf16.msra.mxu0 %v1362
    %1744 = vmatmul.bf16.gmra.mxu0 %v858
    %v1745 = vpop.f32.mrf.mxu0
    %v1746 = vadd.f32 %v996, %v1745
    %v1747 = vpop.f32.mrf.mxu0
    %1748 = vdwg.mxu0
    %1749 = vmatpush.bf16.msra.mxu0 %v1467
    %1750 = vmatpush.bf16.msra.mxu0 %v1460
    %1751 = vmatpush.bf16.msra.mxu0 %v1453
    %1752 = vmatpush.bf16.msra.mxu0 %v1446
    %1753 = vmatpush.bf16.msra.mxu0 %v1439
    %1754 = vmatpush.bf16.msra.mxu0 %v1432
    %1755 = vmatpush.bf16.msra.mxu0 %v1425
    %1756 = vmatpush.bf16.msra.mxu0 %v1418
    %1757 = vmatmul.bf16.gmra.mxu0 %v859
    %v1758 = vpop.f32.mrf.mxu0
    %v1759 = vadd.f32 %v1746, %v1758
    %v1760 = vpop.f32.mrf.mxu0
    %1761 = vdwg.mxu0
    %v1762 = vmul.f32 %v1603, 0.5
    %v1763 = vmul.f32 %v1629, 0.5
    %v1764 = vmul.f32 %v1655, 0.5
    %v1765 = vmul.f32 %v1681, 0.5
    %v1766 = vmul.f32 %v1707, 0.5
    %v1767 = vmul.f32 %v1733, 0.5
    %v1768 = vmul.f32 %v1759, 0.5
    %v1769 = vtanh.pop %v1762
    %v1770 = vtanh.pop %v1763
    %v1771 = vtanh.pop %v1764
    %v1772 = vtanh.pop %v1765
    %v1773 = vtanh.pop %v1766
    %v1774 = vtanh.pop %v1767
    %v1775 = vtanh.pop %v1768
    %v1776 = vadd.f32 %v1769, 1.0
    %v1777 = vadd.f32 %v1770, 1.0
    %v1778 = vadd.f32 %v1771, 1.0
    %v1779 = vadd.f32 %v1772, 1.0
    %v1780 = vadd.f32 %v1773, 1.0
    %v1781 = vadd.f32 %v1774, 1.0
    %v1782 = vadd.f32 %v1775, 1.0
    %v1783 = vmul.f32 %v1776, 0.5
    %v1784 = vmul.f32 %v1777, 0.5
    %v1785 = vmul.f32 %v1778, 0.5
    %v1786 = vmul.f32 %v1779, 0.5
    %v1787 = vmul.f32 %v1780, 0.5
    %v1788 = vmul.f32 %v1781, 0.5
    %v1789 = vmul.f32 %v1782, 0.5
    %v1790 = vpack.c.bf16 %v1783, %v1783
    %v1791 = vpack.c.bf16 %v1784, %v1784
    %v1792 = vpack.c.bf16 %v1785, %v1785
    %v1793 = vpack.c.bf16 %v1786, %v1786
    %v1794 = vpack.c.bf16 %v1787, %v1787
    %v1795 = vpack.c.bf16 %v1788, %v1788
    %v1796 = vpack.c.bf16 %v1789, %v1789
    %v1797 = vld [vmem:[#allocation7] sm:$0xf]
    %v1798 = vld [vmem:[#allocation7 + $0x4] sm:$0xf]
    %v1799 = vld [vmem:[#allocation7 + $0x8] sm:$0xf]
    %v1800 = vld [vmem:[#allocation7 + $0xc] sm:$0xf]
    %v1801 = vld [vmem:[#allocation7 + $0x10] sm:$0xf]
    %v1802 = vld [vmem:[#allocation7 + $0x14] sm:$0xf]
    %v1803 = vld [vmem:[#allocation7 + $0x18] sm:$0xf]
    %v1804 = vld [vmem:[#allocation7 + $0x1c] sm:$0xf]
    %v1805 = vld [vmem:[#allocation7 + $0x20] sm:$0xf]
    %v1806 = vld [vmem:[#allocation7 + $0x24] sm:$0xf]
    %v1807 = vld [vmem:[#allocation7 + $0x28] sm:$0xf]
    %v1808 = vld [vmem:[#allocation7 + $0x2c] sm:$0xf]
    %v1809 = vld [vmem:[#allocation7 + $0x30] sm:$0xf]
    %v1810 = vld [vmem:[#allocation7 + $0x34] sm:$0xf]
    %v1811 = vld [vmem:[#allocation7 + $0x38] sm:$0xf]
    %v1812 = vld [vmem:[#allocation7 + $0x3c] sm:$0xf]
    %v1813 = vld [vmem:[#allocation7 + $0x40] sm:$0xf]
    %v1814 = vld [vmem:[#allocation7 + $0x44] sm:$0xf]
    %v1815 = vld [vmem:[#allocation7 + $0x48] sm:$0xf]
    %v1816 = vld [vmem:[#allocation7 + $0x4c] sm:$0xf]
    %v1817 = vld [vmem:[#allocation7 + $0x50] sm:$0xf]
    %v1818 = vld [vmem:[#allocation7 + $0x54] sm:$0xf]
    %v1819 = vld [vmem:[#allocation7 + $0x58] sm:$0xf]
    %v1820 = vld [vmem:[#allocation7 + $0x5c] sm:$0xf]
    %v1821 = vld [vmem:[#allocation7 + $0x60] sm:$0xf]
    %v1822 = vld [vmem:[#allocation7 + $0x64] sm:$0xf]
    %v1823 = vld [vmem:[#allocation7 + $0x68] sm:$0xf]
    %v1824 = vld [vmem:[#allocation7 + $0x6c] sm:$0xf]
    %v1825 = vld [vmem:[#allocation7 + $0x70] sm:$0xf]
    %v1826 = vld [vmem:[#allocation7 + $0x74] sm:$0xf]
    %v1827 = vld [vmem:[#allocation7 + $0x78] sm:$0xf]
    %v1828 = vld [vmem:[#allocation7 + $0x7c] sm:$0xf]
    %v1829 = vld [vmem:[#allocation7 + $0x80] sm:$0xf]
    %v1830 = vld [vmem:[#allocation7 + $0x84] sm:$0xf]
    %v1831 = vld [vmem:[#allocation7 + $0x88] sm:$0xf]
    %v1832 = vld [vmem:[#allocation7 + $0x8c] sm:$0xf]
    %v1833 = vld [vmem:[#allocation7 + $0x90] sm:$0xf]
    %v1834 = vld [vmem:[#allocation7 + $0x94] sm:$0xf]
    %v1835 = vld [vmem:[#allocation7 + $0x98] sm:$0xf]
    %v1836 = vld [vmem:[#allocation7 + $0x9c] sm:$0xf]
    %v1837 = vld [vmem:[#allocation7 + $0xa0] sm:$0xf]
    %v1838 = vld [vmem:[#allocation7 + $0xa4] sm:$0xf]
    %v1839 = vld [vmem:[#allocation7 + $0xa8] sm:$0xf]
    %v1840 = vld [vmem:[#allocation7 + $0xac] sm:$0xf]
    %v1841 = vld [vmem:[#allocation7 + $0xb0] sm:$0xf]
    %v1842 = vld [vmem:[#allocation7 + $0xb4] sm:$0xf]
    %v1843 = vld [vmem:[#allocation7 + $0xb8] sm:$0xf]
    %v1844 = vld [vmem:[#allocation7 + $0xbc] sm:$0xf]
    %v1845 = vld [vmem:[#allocation7 + $0xc0] sm:$0xf]
    %v1846 = vld [vmem:[#allocation7 + $0xc4] sm:$0xf]
    %v1847 = vld [vmem:[#allocation7 + $0xc8] sm:$0xf]
    %v1848 = vld [vmem:[#allocation7 + $0xcc] sm:$0xf]
    %v1849 = vld [vmem:[#allocation7 + $0xd0] sm:$0xf]
    %v1850 = vld [vmem:[#allocation7 + $0xd4] sm:$0xf]
    %v1851 = vld [vmem:[#allocation7 + $0xd8] sm:$0xf]
    %v1852 = vld [vmem:[#allocation7 + $0xdc] sm:$0xf]
    %v1853 = vld [vmem:[#allocation7 + $0xe0] sm:$0xf]
    %v1854 = vld [vmem:[#allocation7 + $0xe4] sm:$0xf]
    %v1855 = vld [vmem:[#allocation7 + $0xe8] sm:$0xf]
    %v1856 = vld [vmem:[#allocation7 + $0xec] sm:$0xf]
    %v1857 = vld [vmem:[#allocation7 + $0xf0] sm:$0xf]
    %v1858 = vld [vmem:[#allocation7 + $0xf4] sm:$0xf]
    %v1859 = vld [vmem:[#allocation7 + $0xf8] sm:$0xf]
    %v1860 = vld [vmem:[#allocation7 + $0xfc] sm:$0xf]
    %v1861 = vld [vmem:[#allocation7 + $0x100] sm:$0xf]
    %v1862 = vld [vmem:[#allocation7 + $0x104] sm:$0xf]
    %v1863 = vld [vmem:[#allocation7 + $0x108] sm:$0xf]
    %v1864 = vld [vmem:[#allocation7 + $0x10c] sm:$0xf]
    %v1865 = vld [vmem:[#allocation7 + $0x110] sm:$0xf]
    %v1866 = vld [vmem:[#allocation7 + $0x114] sm:$0xf]
    %v1867 = vld [vmem:[#allocation7 + $0x118] sm:$0xf]
    %v1868 = vld [vmem:[#allocation7 + $0x11c] sm:$0xf]
    %v1869 = vld [vmem:[#allocation7 + $0x120] sm:$0xf]
    %v1870 = vld [vmem:[#allocation7 + $0x124] sm:$0xf]
    %v1871 = vld [vmem:[#allocation7 + $0x128] sm:$0xf]
    %v1872 = vld [vmem:[#allocation7 + $0x12c] sm:$0xf]
    %v1873 = vld [vmem:[#allocation7 + $0x130] sm:$0xf]
    %v1874 = vld [vmem:[#allocation7 + $0x134] sm:$0xf]
    %v1875 = vld [vmem:[#allocation7 + $0x138] sm:$0xf]
    %v1876 = vld [vmem:[#allocation7 + $0x13c] sm:$0xf]
    %v1877 = vld [vmem:[#allocation7 + $0x140] sm:$0xf]
    %v1878 = vld [vmem:[#allocation7 + $0x144] sm:$0xf]
    %v1879 = vld [vmem:[#allocation7 + $0x148] sm:$0xf]
    %v1880 = vld [vmem:[#allocation7 + $0x14c] sm:$0xf]
    %v1881 = vld [vmem:[#allocation7 + $0x150] sm:$0xf]
    %v1882 = vld [vmem:[#allocation7 + $0x154] sm:$0xf]
    %v1883 = vld [vmem:[#allocation7 + $0x158] sm:$0xf]
    %v1884 = vld [vmem:[#allocation7 + $0x15c] sm:$0xf]
    %v1885 = vld [vmem:[#allocation7 + $0x160] sm:$0xf]
    %v1886 = vld [vmem:[#allocation7 + $0x164] sm:$0xf]
    %v1887 = vld [vmem:[#allocation7 + $0x168] sm:$0xf]
    %v1888 = vld [vmem:[#allocation7 + $0x16c] sm:$0xf]
    %v1889 = vld [vmem:[#allocation7 + $0x170] sm:$0xf]
    %v1890 = vld [vmem:[#allocation7 + $0x174] sm:$0xf]
    %v1891 = vld [vmem:[#allocation7 + $0x178] sm:$0xf]
    %v1892 = vld [vmem:[#allocation7 + $0x17c] sm:$0xf]
    %v1893 = vld [vmem:[#allocation7 + $0x180] sm:$0xf]
    %v1894 = vld [vmem:[#allocation7 + $0x184] sm:$0xf]
    %v1895 = vld [vmem:[#allocation7 + $0x188] sm:$0xf]
    %v1896 = vld [vmem:[#allocation7 + $0x18c] sm:$0xf]
    %v1897 = vld [vmem:[#allocation7 + $0x190] sm:$0xf]
    %v1898 = vld [vmem:[#allocation7 + $0x194] sm:$0xf]
    %v1899 = vld [vmem:[#allocation7 + $0x198] sm:$0xf]
    %v1900 = vld [vmem:[#allocation7 + $0x19c] sm:$0xf]
    %v1901 = vld [vmem:[#allocation7 + $0x1a0] sm:$0xf]
    %v1902 = vld [vmem:[#allocation7 + $0x1a4] sm:$0xf]
    %v1903 = vld [vmem:[#allocation7 + $0x1a8] sm:$0xf]
    %v1904 = vld [vmem:[#allocation7 + $0x1ac] sm:$0xf]
    %v1905 = vld [vmem:[#allocation7 + $0x1b0] sm:$0xf]
    %v1906 = vld [vmem:[#allocation7 + $0x1b4] sm:$0xf]
    %v1907 = vld [vmem:[#allocation7 + $0x1b8] sm:$0xf]
    %v1908 = vld [vmem:[#allocation7 + $0x1bc] sm:$0xf]
    %v1909 = vld [vmem:[%s8] sm:$0x1]
    %v1911 = vperm.slane %v1909, 0
    %v2025 = vunpack.c.l.b16 %v1797
    %v2026 = vunpack.c.l.b16 %v1798
    %v2027 = vunpack.c.l.b16 %v1799
    %v2028 = vunpack.c.l.b16 %v1800
    %v2029 = vunpack.c.l.b16 %v1801
    %v2030 = vunpack.c.l.b16 %v1802
    %v2031 = vunpack.c.l.b16 %v1803
    %v2032 = vunpack.c.l.b16 %v1804
    %v2033 = vunpack.c.l.b16 %v1805
    %v2034 = vunpack.c.l.b16 %v1806
    %v2035 = vunpack.c.l.b16 %v1807
    %v2036 = vunpack.c.l.b16 %v1808
    %v2037 = vunpack.c.l.b16 %v1809
    %v2038 = vunpack.c.l.b16 %v1810
    %v2039 = vunpack.c.l.b16 %v1811
    %v2040 = vunpack.c.l.b16 %v1812
    %v2041 = vunpack.c.l.b16 %v1813
    %v2042 = vunpack.c.l.b16 %v1814
    %v2043 = vunpack.c.l.b16 %v1815
    %v2044 = vunpack.c.l.b16 %v1816
    %v2045 = vunpack.c.l.b16 %v1817
    %v2046 = vunpack.c.l.b16 %v1818
    %v2047 = vunpack.c.l.b16 %v1819
    %v2048 = vunpack.c.l.b16 %v1820
    %v2049 = vunpack.c.l.b16 %v1821
    %v2050 = vunpack.c.l.b16 %v1822
    %v2051 = vunpack.c.l.b16 %v1823
    %v2052 = vunpack.c.l.b16 %v1824
    %v2053 = vunpack.c.l.b16 %v1825
    %v2054 = vunpack.c.l.b16 %v1826
    %v2055 = vunpack.c.l.b16 %v1827
    %v2056 = vunpack.c.l.b16 %v1828
    %v2057 = vunpack.c.l.b16 %v1829
    %v2058 = vunpack.c.l.b16 %v1830
    %v2059 = vunpack.c.l.b16 %v1831
    %v2060 = vunpack.c.l.b16 %v1832
    %v2061 = vunpack.c.l.b16 %v1833
    %v2062 = vunpack.c.l.b16 %v1834
    %v2063 = vunpack.c.l.b16 %v1835
    %v2064 = vunpack.c.l.b16 %v1836
    %v2065 = vunpack.c.l.b16 %v1837
    %v2066 = vunpack.c.l.b16 %v1838
    %v2067 = vunpack.c.l.b16 %v1839
    %v2068 = vunpack.c.l.b16 %v1840
    %v2069 = vunpack.c.l.b16 %v1841
    %v2070 = vunpack.c.l.b16 %v1842
    %v2071 = vunpack.c.l.b16 %v1843
    %v2072 = vunpack.c.l.b16 %v1844
    %v2073 = vunpack.c.l.b16 %v1845
    %v2074 = vunpack.c.l.b16 %v1846
    %v2075 = vunpack.c.l.b16 %v1847
    %v2076 = vunpack.c.l.b16 %v1848
    %v2077 = vunpack.c.l.b16 %v1849
    %v2078 = vunpack.c.l.b16 %v1850
    %v2079 = vunpack.c.l.b16 %v1851
    %v2080 = vunpack.c.l.b16 %v1852
    %v2081 = vunpack.c.l.b16 %v1853
    %v2082 = vunpack.c.l.b16 %v1854
    %v2083 = vunpack.c.l.b16 %v1855
    %v2084 = vunpack.c.l.b16 %v1856
    %v2085 = vunpack.c.l.b16 %v1857
    %v2086 = vunpack.c.l.b16 %v1858
    %v2087 = vunpack.c.l.b16 %v1859
    %v2088 = vunpack.c.l.b16 %v1860
    %v2089 = vunpack.c.l.b16 %v1861
    %v2090 = vunpack.c.l.b16 %v1862
    %v2091 = vunpack.c.l.b16 %v1863
    %v2092 = vunpack.c.l.b16 %v1864
    %v2093 = vunpack.c.l.b16 %v1865
    %v2094 = vunpack.c.l.b16 %v1866
    %v2095 = vunpack.c.l.b16 %v1867
    %v2096 = vunpack.c.l.b16 %v1868
    %v2097 = vunpack.c.l.b16 %v1869
    %v2098 = vunpack.c.l.b16 %v1870
    %v2099 = vunpack.c.l.b16 %v1871
    %v2100 = vunpack.c.l.b16 %v1872
    %v2101 = vunpack.c.l.b16 %v1873
    %v2102 = vunpack.c.l.b16 %v1874
    %v2103 = vunpack.c.l.b16 %v1875
    %v2104 = vunpack.c.l.b16 %v1876
    %v2105 = vunpack.c.l.b16 %v1877
    %v2106 = vunpack.c.l.b16 %v1878
    %v2107 = vunpack.c.l.b16 %v1879
    %v2108 = vunpack.c.l.b16 %v1880
    %v2109 = vunpack.c.l.b16 %v1881
    %v2110 = vunpack.c.l.b16 %v1882
    %v2111 = vunpack.c.l.b16 %v1883
    %v2112 = vunpack.c.l.b16 %v1884
    %v2113 = vunpack.c.l.b16 %v1885
    %v2114 = vunpack.c.l.b16 %v1886
    %v2115 = vunpack.c.l.b16 %v1887
    %v2116 = vunpack.c.l.b16 %v1888
    %v2117 = vunpack.c.l.b16 %v1889
    %v2118 = vunpack.c.l.b16 %v1890
    %v2119 = vunpack.c.l.b16 %v1891
    %v2120 = vunpack.c.l.b16 %v1892
    %v2121 = vunpack.c.l.b16 %v1893
    %v2122 = vunpack.c.l.b16 %v1894
    %v2123 = vunpack.c.l.b16 %v1895
    %v2124 = vunpack.c.l.b16 %v1896
    %v2125 = vunpack.c.l.b16 %v1897
    %v2126 = vunpack.c.l.b16 %v1898
    %v2127 = vunpack.c.l.b16 %v1899
    %v2128 = vunpack.c.l.b16 %v1900
    %v2129 = vunpack.c.l.b16 %v1901
    %v2130 = vunpack.c.l.b16 %v1902
    %v2131 = vunpack.c.l.b16 %v1903
    %v2132 = vunpack.c.l.b16 %v1904
    %v2133 = vunpack.c.l.b16 %v1905
    %v2134 = vunpack.c.l.b16 %v1906
    %v2135 = vunpack.c.l.b16 %v1907
    %v2136 = vunpack.c.l.b16 %v1908
    %v2137 = vpack.c.b16 %v2026, %v2025
    %v2138 = vpack.c.b16 %v2028, %v2027
    %v2139 = vpack.c.b16 %v2030, %v2029
    %v2140 = vpack.c.b16 %v2032, %v2031
    %v2141 = vpack.c.b16 %v2034, %v2033
    %v2142 = vpack.c.b16 %v2036, %v2035
    %v2143 = vpack.c.b16 %v2038, %v2037
    %v2144 = vpack.c.b16 %v2040, %v2039
    %v2145 = vpack.c.b16 %v2042, %v2041
    %v2146 = vpack.c.b16 %v2044, %v2043
    %v2147 = vpack.c.b16 %v2046, %v2045
    %v2148 = vpack.c.b16 %v2048, %v2047
    %v2149 = vpack.c.b16 %v2050, %v2049
    %v2150 = vpack.c.b16 %v2052, %v2051
    %v2151 = vpack.c.b16 %v2054, %v2053
    %v2152 = vpack.c.b16 %v2056, %v2055
    %v2153 = vpack.c.b16 %v2058, %v2057
    %v2154 = vpack.c.b16 %v2060, %v2059
    %v2155 = vpack.c.b16 %v2062, %v2061
    %v2156 = vpack.c.b16 %v2064, %v2063
    %v2157 = vpack.c.b16 %v2066, %v2065
    %v2158 = vpack.c.b16 %v2068, %v2067
    %v2159 = vpack.c.b16 %v2070, %v2069
    %v2160 = vpack.c.b16 %v2072, %v2071
    %v2161 = vpack.c.b16 %v2074, %v2073
    %v2162 = vpack.c.b16 %v2076, %v2075
    %v2163 = vpack.c.b16 %v2078, %v2077
    %v2164 = vpack.c.b16 %v2080, %v2079
    %v2165 = vpack.c.b16 %v2082, %v2081
    %v2166 = vpack.c.b16 %v2084, %v2083
    %v2167 = vpack.c.b16 %v2086, %v2085
    %v2168 = vpack.c.b16 %v2088, %v2087
    %v2169 = vpack.c.b16 %v2090, %v2089
    %v2170 = vpack.c.b16 %v2092, %v2091
    %v2171 = vpack.c.b16 %v2094, %v2093
    %v2172 = vpack.c.b16 %v2096, %v2095
    %v2173 = vpack.c.b16 %v2098, %v2097
    %v2174 = vpack.c.b16 %v2100, %v2099
    %v2175 = vpack.c.b16 %v2102, %v2101
    %v2176 = vpack.c.b16 %v2104, %v2103
    %v2177 = vpack.c.b16 %v2106, %v2105
    %v2178 = vpack.c.b16 %v2108, %v2107
    %v2179 = vpack.c.b16 %v2110, %v2109
    %v2180 = vpack.c.b16 %v2112, %v2111
    %v2181 = vpack.c.b16 %v2114, %v2113
    %v2182 = vpack.c.b16 %v2116, %v2115
    %v2183 = vpack.c.b16 %v2118, %v2117
    %v2184 = vpack.c.b16 %v2120, %v2119
    %v2185 = vpack.c.b16 %v2122, %v2121
    %v2186 = vpack.c.b16 %v2124, %v2123
    %v2187 = vpack.c.b16 %v2126, %v2125
    %v2188 = vpack.c.b16 %v2128, %v2127
    %v2189 = vpack.c.b16 %v2130, %v2129
    %v2190 = vpack.c.b16 %v2132, %v2131
    %v2191 = vpack.c.b16 %v2134, %v2133
    %v2192 = vpack.c.b16 %v2136, %v2135
    %2249 = vmatpush.bf16.msra.mxu0 %v2144
    %2250 = vmatpush.bf16.msra.mxu0 %v2143
    %2251 = vmatpush.bf16.msra.mxu0 %v2142
    %2252 = vmatpush.bf16.msra.mxu0 %v2141
    %2253 = vmatpush.bf16.msra.mxu0 %v2140
    %2254 = vmatpush.bf16.msra.mxu0 %v2139
    %2255 = vmatpush.bf16.msra.mxu0 %v2138
    %2256 = vmatpush.bf16.msra.mxu0 %v2137
    %2257 = vmatmul.bf16.gmra.mxu0 %v1790
    %v2258 = vpop.f32.mrf.mxu0
    %v2259 = vadd.f32 %v1911, %v2258
    %v2260 = vpop.f32.mrf.mxu0
    %2261 = vdwg.mxu0
    %2262 = vmatpush.bf16.msra.mxu0 %v2152
    %2263 = vmatpush.bf16.msra.mxu0 %v2151
    %2264 = vmatpush.bf16.msra.mxu0 %v2150
    %2265 = vmatpush.bf16.msra.mxu0 %v2149
    %2266 = vmatpush.bf16.msra.mxu0 %v2148
    %2267 = vmatpush.bf16.msra.mxu0 %v2147
    %2268 = vmatpush.bf16.msra.mxu0 %v2146
    %2269 = vmatpush.bf16.msra.mxu0 %v2145
    %2270 = vmatmul.bf16.gmra.mxu0 %v1791
    %v2271 = vpop.f32.mrf.mxu0
    %v2272 = vadd.f32 %v2259, %v2271
    %v2273 = vpop.f32.mrf.mxu0
    %2274 = vdwg.mxu0
    %2275 = vmatpush.bf16.msra.mxu0 %v2160
    %2276 = vmatpush.bf16.msra.mxu0 %v2159
    %2277 = vmatpush.bf16.msra.mxu0 %v2158
    %2278 = vmatpush.bf16.msra.mxu0 %v2157
    %2279 = vmatpush.bf16.msra.mxu0 %v2156
    %2280 = vmatpush.bf16.msra.mxu0 %v2155
    %2281 = vmatpush.bf16.msra.mxu0 %v2154
    %2282 = vmatpush.bf16.msra.mxu0 %v2153
    %2283 = vmatmul.bf16.gmra.mxu0 %v1792
    %v2284 = vpop.f32.mrf.mxu0
    %v2285 = vadd.f32 %v2272, %v2284
    %v2286 = vpop.f32.mrf.mxu0
    %2287 = vdwg.mxu0
    %2288 = vmatpush.bf16.msra.mxu0 %v2168
    %2289 = vmatpush.bf16.msra.mxu0 %v2167
    %2290 = vmatpush.bf16.msra.mxu0 %v2166
    %2291 = vmatpush.bf16.msra.mxu0 %v2165
    %2292 = vmatpush.bf16.msra.mxu0 %v2164
    %2293 = vmatpush.bf16.msra.mxu0 %v2163
    %2294 = vmatpush.bf16.msra.mxu0 %v2162
    %2295 = vmatpush.bf16.msra.mxu0 %v2161
    %2296 = vmatmul.bf16.gmra.mxu0 %v1793
    %v2297 = vpop.f32.mrf.mxu0
    %v2298 = vadd.f32 %v2285, %v2297
    %v2299 = vpop.f32.mrf.mxu0
    %2300 = vdwg.mxu0
    %2301 = vmatpush.bf16.msra.mxu0 %v2176
    %2302 = vmatpush.bf16.msra.mxu0 %v2175
    %2303 = vmatpush.bf16.msra.mxu0 %v2174
    %2304 = vmatpush.bf16.msra.mxu0 %v2173
    %2305 = vmatpush.bf16.msra.mxu0 %v2172
    %2306 = vmatpush.bf16.msra.mxu0 %v2171
    %2307 = vmatpush.bf16.msra.mxu0 %v2170
    %2308 = vmatpush.bf16.msra.mxu0 %v2169
    %2309 = vmatmul.bf16.gmra.mxu0 %v1794
    %v2310 = vpop.f32.mrf.mxu0
    %v2311 = vadd.f32 %v2298, %v2310
    %v2312 = vpop.f32.mrf.mxu0
    %2313 = vdwg.mxu0
    %2314 = vmatpush.bf16.msra.mxu0 %v2184
    %2315 = vmatpush.bf16.msra.mxu0 %v2183
    %2316 = vmatpush.bf16.msra.mxu0 %v2182
    %2317 = vmatpush.bf16.msra.mxu0 %v2181
    %2318 = vmatpush.bf16.msra.mxu0 %v2180
    %2319 = vmatpush.bf16.msra.mxu0 %v2179
    %2320 = vmatpush.bf16.msra.mxu0 %v2178
    %2321 = vmatpush.bf16.msra.mxu0 %v2177
    %2322 = vmatmul.bf16.gmra.mxu0 %v1795
    %v2323 = vpop.f32.mrf.mxu0
    %v2324 = vadd.f32 %v2311, %v2323
    %v2325 = vpop.f32.mrf.mxu0
    %2326 = vdwg.mxu0
    %2327 = vmatpush.bf16.msra.mxu0 %v2192
    %2328 = vmatpush.bf16.msra.mxu0 %v2191
    %2329 = vmatpush.bf16.msra.mxu0 %v2190
    %2330 = vmatpush.bf16.msra.mxu0 %v2189
    %2331 = vmatpush.bf16.msra.mxu0 %v2188
    %2332 = vmatpush.bf16.msra.mxu0 %v2187
    %2333 = vmatpush.bf16.msra.mxu0 %v2186
    %2334 = vmatpush.bf16.msra.mxu0 %v2185
    %2335 = vmatmul.bf16.gmra.mxu0 %v1796
    %v2336 = vpop.f32.mrf.mxu0
    %v2337 = vadd.f32 %v2324, %v2336
    %v2338 = vpop.f32.mrf.mxu0
    %2339 = vdwg.mxu0
    %vm2340 = vcmask 58368
    %2341 = vst.msk [vmem:[#allocation8] sm:$0x3] %vm2340, %v2337
    // Predicated region
    $region50: #{fwd.1} parent=1 // pred_check
      _
    $region51: #{fwd.1} parent=1 // pred_check_branch
      %2343 = sbr.rel (0) target = $region53
    $region52: #{fwd.1} parent=1 // pred_region
      %2345 = vsyncadd [#allocation4], 0
      %s2347 = sshll.u32 [#allocation8], 4
      %s2348 = int_to_ptr.vmem [resolvable:$true] %s2347
      %s2349 = sshll.u32 %s9, 4
      %s2350 = int_to_ptr.hbm [resolvable:$true] %s2349
      %2352 = dma.vmem_to_hbm [thread:$0]  %s2348, 32, %s2350, [#allocation4]
    $region53: #{fwd.1} parent=1 // pred_fallthru
      _
    // Predicated region
    $region54: #{fwd.1} parent=1 // pred_check
      _
    $region55: #{fwd.1} parent=1 // pred_check_branch
      %2354 = sbr.rel (0) target = $region57
    $region56: #{fwd.1} parent=1 // pred_region
      %2356 = dma.done [#allocation4], 32
    $region57: #{fwd.1} parent=1 // pred_fallthru
      _
    %2357 = vsyncpa [#allocation3], 1
    %2358 = vsyncpa [#allocation6], 1
    %2359 = vsyncpa [#allocation4], 1

</llo_original>
